<compile_context>
chip_gen: v7x
topology: tpu7x:2x2x1
jax: 0.10.0
libtpu: 0.0.40
codegen_flags: <defaults>
</compile_context>

<pallas_src>
import numpy as np

import jax
import jax.numpy as jnp
from jax.experimental import pallas as pl
from jax.experimental.pallas import tpu as pltpu

N_QUBITS = 4
DEPTH = 1
Q_KERNEL = 4        # Quanv2d(kernel_size=4)
LANE_TILE = 128     # lane-axis tile; grid axis marked "parallel"
INV_SQRT2 = 0.7071067811865476
HI = jax.lax.Precision.HIGHEST   # keep host-side compositions at f32 accuracy


def _round_up(n, m):
    return ((n + m - 1) // m) * m


# ---------------------------------------------------------------------------
# Pallas kernel 1: matmul + bias (fused classic branch via im2col)
# ---------------------------------------------------------------------------
def _matmul_bias_kernel(w_ref, x_ref, b_ref, o_ref):
    o_ref[...] = (
        jnp.dot(w_ref[...], x_ref[...], preferred_element_type=jnp.float32)
        + b_ref[...]
    )


def matmul_bias(w, x, b):
    """(M,K) @ (K,Np) + (M,1); Np must be a multiple of LANE_TILE."""
    M, K = w.shape
    Np = x.shape[1]
    return pl.pallas_call(
        _matmul_bias_kernel,
        grid=(Np // LANE_TILE,),
        out_shape=jax.ShapeDtypeStruct((M, Np), jnp.float32),
        in_specs=[
            pl.BlockSpec((M, K), lambda j: (0, 0)),
            pl.BlockSpec((K, LANE_TILE), lambda j: (0, j)),
            pl.BlockSpec((M, 1), lambda j: (0, 0)),
        ],
        out_specs=pl.BlockSpec((M, LANE_TILE), lambda j: (0, j)),
        compiler_params=pltpu.CompilerParams(dimension_semantics=("parallel",)),
    )(w.astype(jnp.float32), x.astype(jnp.float32), b.astype(jnp.float32))


def fused_classic_branch(x, w1, b1, w2, b2):
    """conv1x1 (C->4) followed by conv 4x4 / stride 2 (4->8), fused into ONE matmul."""
    B, C, H, W = x.shape
    M, C1, KH, KW = w2.shape
    stride = 2
    Ho = (H - KH) // stride + 1
    Wo = (W - KW) // stride + 1

    # Pre-compose weights / bias in plain JAX (f32-exact).
    w1m = w1.reshape(C1, C)
    w_eff = jnp.einsum("mpij,pc->mcij", w2, w1m, precision=HI).reshape(M, C * KH * KW)
    b_eff = (jnp.einsum("mpij,p->m", w2, b1, precision=HI) + b2).reshape(M, 1)

    # im2col of the ORIGINAL input via one static gather, built lane-padded.
    N = B * Ho * Wo
    Np = _round_up(N, LANE_TILE)
    c_i, ki_i, kj_i = np.meshgrid(np.arange(C), np.arange(KH), np.arange(KW),
                                  indexing="ij")
    row_off = (c_i * H * W + ki_i * W + kj_i).reshape(-1)               # (C*KH*KW,)
    b_i, ho_i, wo_i = np.meshgrid(np.arange(B), np.arange(Ho), np.arange(Wo),
                                  indexing="ij")
    col_off = (b_i * C * H * W + stride * ho_i * W + stride * wo_i).reshape(-1)
    idx = row_off[:, None] + col_off[None, :]                           # (K, N)
    idx = np.pad(idx, ((0, 0), (0, Np - N)))                            # pad lanes
    patches = jnp.take(x.reshape(-1).astype(jnp.float32),
                       jnp.asarray(idx, jnp.int32))                     # (K, Np)

    y = matmul_bias(w_eff, patches, b_eff)[:, :N]                       # (M, N)
    return y.reshape(M, B, Ho, Wo).transpose(1, 0, 2, 3)                # (B, M, Ho, Wo)


# ---------------------------------------------------------------------------
# Pallas kernel 2: exact 4-qubit state-vector simulation, one circuit per lane.
# ---------------------------------------------------------------------------
def _quantum_constants():
    """One-hot selectors for the tensor-product expansion + <Z_q> readout."""
    sel0 = np.zeros((16 * N_QUBITS, N_QUBITS), np.float32)   # pick v_q[0]
    sel1 = np.zeros((16 * N_QUBITS, N_QUBITS), np.float32)   # pick v_q[1]
    zmat = np.zeros((N_QUBITS, 16), np.float32)              # <Z_q> readout
    for q in range(N_QUBITS):
        bit = 1 << (N_QUBITS - 1 - q)                        # qubit 0 = MSB
        for a in range(16):
            if a & bit:
                sel1[16 * q + a, q] = 1.0
                zmat[q, a] = -1.0
            else:
                sel0[16 * q + a, q] = 1.0
                zmat[q, a] = 1.0
    return sel0, sel1, zmat


def _entangling_unitary(qweights):
    """Compose CRZ ring + RY layer into one 16x16 complex unitary (plain JAX)."""
    ur = jnp.eye(16, dtype=jnp.float32)
    ui = jnp.zeros((16, 16), jnp.float32)
    for d in range(DEPTH):
        for g in range(N_QUBITS):                                  # CRZ ring
            theta = qweights[d, g]
            ctrl, tgt = g, (g + 1) % N_QUBITS
            cbit = 1 << (N_QUBITS - 1 - ctrl)
            tbit = 1 << (N_QUBITS - 1 - tgt)
            coef = np.array([0.0 if not (a & cbit) else (0.5 if (a & tbit) else -0.5)
                             for a in range(16)], np.float32)
            dre = jnp.cos(coef * theta)[:, None]
            dim = jnp.sin(coef * theta)[:, None]
            ur, ui = dre * ur - dim * ui, dre * ui + dim * ur
        for g in range(N_QUBITS, 2 * N_QUBITS):                    # RY layer
            theta = qweights[d, g]
            q = g % N_QUBITS
            bit = 1 << (N_QUBITS - 1 - q)
            bq = np.zeros((16, 16), np.float32)
            for a in range(16):
                bq[a, a ^ bit] = 1.0 if (a & bit) else -1.0
            rot = (jnp.cos(0.5 * theta) * jnp.eye(16, dtype=jnp.float32)
                   + jnp.sin(0.5 * theta) * jnp.asarray(bq))
            ur = jnp.dot(rot, ur, precision=HI)
            ui = jnp.dot(rot, ui, precision=HI)
    return ur, ui


def _patch_layout(B, C, H, W, kernel_size):
    """Static (numpy) mapping: patch pixels -> canonical (gate-slot, qubit) rows.

    Row layout of the angle slab is slot-major: row = slot_ii * 4 + qubit, so the
    kernel can apply one gate-slot to ALL four qubits with a single 4-row slice.
    """
    patch_list = []
    for i in range(0, H - 1, 2):
        for j in range(0, W - 1, 2):
            hh = min(kernel_size, H - i)
            ww = min(kernel_size, W - j)
            patch_list.append((i, j, hh, ww))
    vpq_max = max(C * hh * ww for (_, _, hh, ww) in patch_list) // N_QUBITS + 1
    n_rows = N_QUBITS * vpq_max
    P = len(patch_list)
    n_circ = P * B
    Np = _round_up(n_circ, LANE_TILE)
    idx = np.zeros((n_rows, Np), np.int64)
    valid = np.zeros((n_rows, Np), bool)
    for p, (i, j, hh, ww) in enumerate(patch_list):
        L = C * hh * ww
        vpq = L // N_QUBITS + 1                       # = int(L / n_qubits) + 1
        for k in range(L):
            q, ii = k // vpq, k % vpq
            row = ii * N_QUBITS + q
            c = k // (hh * ww)
            rem = k % (hh * ww)
            ih, iw = rem // ww, rem % ww
            for b in range(B):
                n = p * B + b
                idx[row, n] = ((b * C + c) * H + (i + ih)) * W + (j + iw)
                valid[row, n] = True
    return vpq_max, P, n_circ, Np, idx, valid


def _make_quantum_kernel(vpq_max):
    def kernel(c_ref, s_ref, sel0_ref, sel1_ref, ur_ref, ui_ref, zmat_ref, o_ref):
        w = c_ref.shape[1]
        # Per-qubit 2-amplitude states (one circuit per lane).  H|0> = (1,1)/sqrt(2).
        re0 = jnp.full((N_QUBITS, w), INV_SQRT2, jnp.float32)   # Re v_q[0]
        re1 = jnp.full((N_QUBITS, w), INV_SQRT2, jnp.float32)   # Re v_q[1]
        im0 = jnp.zeros((N_QUBITS, w), jnp.float32)
        im1 = jnp.zeros((N_QUBITS, w), jnp.float32)
        # Angle-encoding layer: slot ii applies RZ (even) / RY (odd) to all qubits
        # at once; zero angles (unused canonical slots) are exact identities.
        for ii in range(vpq_max):
            cc = c_ref[N_QUBITS * ii:N_QUBITS * (ii + 1), :]
            ss = s_ref[N_QUBITS * ii:N_QUBITS * (ii + 1), :]
            if ii % 2 == 0:   # RZ: v0 *= e^{-i t/2},  v1 *= e^{+i t/2}
                re0, im0 = cc * re0 + ss * im0, cc * im0 - ss * re0
                re1, im1 = cc * re1 - ss * im1, cc * im1 + ss * re1
            else:             # RY: [v0,v1] <- [[c,-s],[s,c]] [v0,v1]
                re0, re1 = cc * re0 - ss * re1, ss * re0 + cc * re1
                im0, im1 = cc * im0 - ss * im1, ss * im0 + cc * im1
        # Tensor-product expansion: X_q[a] = v_q[bit_q(a)]  (one-hot matmuls).
        xr = (jnp.dot(sel0_ref[...], re0, preferred_element_type=jnp.float32)
              + jnp.dot(sel1_ref[...], re1, preferred_element_type=jnp.float32))
        xi = (jnp.dot(sel0_ref[...], im0, preferred_element_type=jnp.float32)
              + jnp.dot(sel1_ref[...], im1, preferred_element_type=jnp.float32))
        x0r, x1r, x2r, x3r = xr[0:16], xr[16:32], xr[32:48], xr[48:64]
        x0i, x1i, x2i, x3i = xi[0:16], xi[16:32], xi[32:48], xi[48:64]
        t01r = x0r * x1r - x0i * x1i
        t01i = x0r * x1i + x0i * x1r
        t23r = x2r * x3r - x2i * x3i
        t23i = x2r * x3i + x2i * x3r
        amp_r = t01r * t23r - t01i * t23i          # (16, w) full state, real part
        amp_i = t01r * t23i + t01i * t23r
        # Entangling layer (pre-composed 16x16 unitary).
        ur = ur_ref[...]
        ui = ui_ref[...]
        fr = (jnp.dot(ur, amp_r, preferred_element_type=jnp.float32)
              - jnp.dot(ui, amp_i, preferred_element_type=jnp.float32))
        fi = (jnp.dot(ur, amp_i, preferred_element_type=jnp.float32)
              + jnp.dot(ui, amp_r, preferred_element_type=jnp.float32))
        # <Z_q> readout.
        prob = fr * fr + fi * fi
        o_ref[...] = jnp.dot(zmat_ref[...], prob, preferred_element_type=jnp.float32)
    return kernel


def quanv2d_forward(x, qweights, kernel_size=Q_KERNEL):
    B, C, H, W = x.shape
    vpq_max, P, n_circ, Np, idx, valid = _patch_layout(B, C, H, W, kernel_size)
    n_rows = N_QUBITS * vpq_max

    # Lane-padded angle slab via a single static gather; transcendentals hoisted
    # out of the kernel (they would otherwise serialize on the EUP).
    x_flat = x.reshape(-1).astype(jnp.float32)
    ang = jnp.where(jnp.asarray(valid),
                    jnp.take(x_flat, jnp.asarray(idx, jnp.int32)), 0.0)   # (n_rows, Np)
    c = jnp.cos(0.5 * ang)
    s = jnp.sin(0.5 * ang)

    sel0_np, sel1_np, zmat_np = _quantum_constants()
    ur, ui = _entangling_unitary(qweights.astype(jnp.float32))

    out = pl.pallas_call(
        _make_quantum_kernel(vpq_max),
        grid=(Np // LANE_TILE,),
        out_shape=jax.ShapeDtypeStruct((N_QUBITS, Np), jnp.float32),
        in_specs=[
            pl.BlockSpec((n_rows, LANE_TILE), lambda j: (0, j)),
            pl.BlockSpec((n_rows, LANE_TILE), lambda j: (0, j)),
            pl.BlockSpec((16 * N_QUBITS, N_QUBITS), lambda j: (0, 0)),
            pl.BlockSpec((16 * N_QUBITS, N_QUBITS), lambda j: (0, 0)),
            pl.BlockSpec((16, 16), lambda j: (0, 0)),
            pl.BlockSpec((16, 16), lambda j: (0, 0)),
            pl.BlockSpec((N_QUBITS, 16), lambda j: (0, 0)),
        ],
        out_specs=pl.BlockSpec((N_QUBITS, LANE_TILE), lambda j: (0, j)),
        compiler_params=pltpu.CompilerParams(dimension_semantics=("parallel",)),
    )(c, s, jnp.asarray(sel0_np), jnp.asarray(sel1_np), ur, ui, jnp.asarray(zmat_np))

    out = out[:, :n_circ].reshape(N_QUBITS, P, B)        # [q, patch, batch]
    return out.transpose(2, 1, 0).reshape(B, P * N_QUBITS)


# ---------------------------------------------------------------------------
# Inception forward
# ---------------------------------------------------------------------------
def inception_forward(x, params):
    classic = fused_classic_branch(x, params["w1"], params["b1"],
                                   params["w2"], params["b2"])
    quantum = quanv2d_forward(x, params["qw"])
    B = x.shape[0]
    # TODO(synk): torch.cat([4-D classic, 2-D quantum], dim=1) in the reference
    # is ill-formed; we flatten the classic branch so the channel-concat is defined.
    return jnp.concatenate([classic.reshape(B, -1), quantum], axis=1)


# ---------------------------------------------------------------------------
# Pure numpy float64 reference of the PennyLane circuit (correctness check only)
# ---------------------------------------------------------------------------
def _np_apply_1q(state, u, q):
    st = state.reshape((2,) * N_QUBITS)
    st = np.moveaxis(np.tensordot(u, st, axes=([1], [q])), 0, q)
    return st.reshape(-1)


def _np_apply_crz(state, theta, ctrl, tgt):
    st = state.reshape((2,) * N_QUBITS).copy()
    rz = np.diag([np.exp(-0.5j * theta), np.exp(0.5j * theta)])
    sl = [slice(None)] * N_QUBITS
    sl[ctrl] = 1
    sub = st[tuple(sl)]
    tq = tgt - 1 if tgt > ctrl else tgt
    sub = np.moveaxis(np.tensordot(rz, sub, axes=([1], [tq])), 0, tq)
    st[tuple(sl)] = sub
    return st.reshape(-1)


def _np_circuit_ref(inputs, weights):
    had = np.array([[1.0, 1.0], [1.0, -1.0]], np.complex128) / np.sqrt(2.0)
    state = np.zeros(16, np.complex128)
    state[0] = 1.0
    L = len(inputs)
    vpq = L // N_QUBITS + 1
    for q in range(N_QUBITS):
        state = _np_apply_1q(state, had, q)
        for i in range(vpq):
            k = q * vpq + i
            if k >= L:
                continue
            th = float(inputs[k])
            if i % 2 == 0:                      # RZ
                u = np.diag([np.exp(-0.5j * th), np.exp(0.5j * th)])
            else:                               # RY
                cc, ss = np.cos(th / 2.0), np.sin(th / 2.0)
                u = np.array([[cc, -ss], [ss, cc]], np.complex128)
            state = _np_apply_1q(state, u, q)
    for d in range(DEPTH):
        for g in range(N_QUBITS):
            state = _np_apply_crz(state, float(weights[d, g]), g, (g + 1) % N_QUBITS)
        for g in range(N_QUBITS, 2 * N_QUBITS):
            th = float(weights[d, g])
            u = np.array([[np.cos(th / 2), -np.sin(th / 2)],
                          [np.sin(th / 2), np.cos(th / 2)]], np.complex128)
            state = _np_apply_1q(state, u, g % N_QUBITS)
    probs = np.abs(state) ** 2
    z = np.zeros(N_QUBITS)
    for q in range(N_QUBITS):
        bit = 1 << (N_QUBITS - 1 - q)
        sign = np.array([-1.0 if (a & bit) else 1.0 for a in range(16)])
        z[q] = float(np.dot(sign, probs))
    return z


if __name__ == "__main__":
    key = jax.random.PRNGKey(0)
    k_x, k_w1, k_b1, k_w2, k_b2, k_qw = jax.random.split(key, 6)
    B, C, H, W = 2, 4, 16, 16
    x = jax.random.normal(k_x, (B, C, H, W), dtype=jnp.float32)
    params = {
        "w1": 0.5 * jax.random.normal(k_w1, (4, C, 1, 1), dtype=jnp.float32),
        "b1": 0.1 * jax.random.normal(k_b1, (4,), dtype=jnp.float32),
        "w2": 0.25 * jax.random.normal(k_w2, (8, 4, 4, 4), dtype=jnp.float32),
        "b2": 0.1 * jax.random.normal(k_b2, (8,), dtype=jnp.float32),
        # TorchLayer default init is U[0, 2*pi); done deterministically here.
        "qw": jax.random.uniform(k_qw, (DEPTH, 2 * N_QUBITS), dtype=jnp.float32,
                                 minval=0.0, maxval=2.0 * jnp.pi),
    }

    fwd = jax.jit(inception_forward)
    out = jax.block_until_ready(fwd(x, params))

    Ho = Wo = (H - 4) // 2 + 1
    n_classic = 8 * Ho * Wo
    n_i = len(range(0, H - 1, 2))
    n_j = len(range(0, W - 1, 2))
    P = n_i * n_j
    assert out.shape == (B, n_classic + P * N_QUBITS), out.shape
    assert bool(jnp.all(jnp.isfinite(out)))

    # --- classic-branch check against lax.conv (f32 precision) ---
    conv1 = jax.lax.conv(x, params["w1"], (1, 1), "VALID",
                         precision=HI) + params["b1"][None, :, None, None]
    conv2 = jax.lax.conv(conv1, params["w2"], (2, 2), "VALID",
                         precision=HI) + params["b2"][None, :, None, None]
    np.testing.assert_allclose(np.asarray(out[:, :n_classic]),
                               np.asarray(conv2).reshape(B, -1),
                               rtol=1e-3, atol=1e-3)

    # --- quantum-branch check against a dense float64 circuit simulation ---
    quantum = np.asarray(out[:, n_classic:])
    assert float(np.max(np.abs(quantum))) <= 1.0 + 1e-4   # Pauli-Z expvals
    x_np = np.asarray(x, np.float64)
    qw_np = np.asarray(params["qw"], np.float64)
    patch_list = [(i, j, min(Q_KERNEL, H - i), min(Q_KERNEL, W - j))
                  for i in range(0, H - 1, 2) for j in range(0, W - 1, 2)]
    for (p, b) in [(0, 0), (n_j - 1, 1), (P - 1, 0), (P - 1, 1)]:
        pi, pj, hh, ww = patch_list[p]
        inputs = x_np[b, :, pi:pi + hh, pj:pj + ww].reshape(-1)
        ref = _np_circuit_ref(inputs, qw_np)
        np.testing.assert_allclose(quantum[b, 4 * p:4 * p + 4], ref,
                                   rtol=0.0, atol=1e-3)

    print("KERNEL_OK")
</pallas_src>

<mosaic_0001>
module attributes {stable_mosaic.version = 11 : i64} {
  func.func @_matmul_bias_kernel(%arg0: i32, %arg1: memref<8x64xf32, #tpu.memory_space<vmem>>, %arg2: memref<64x128xf32, #tpu.memory_space<vmem>>, %arg3: memref<8x1xf32, #tpu.memory_space<vmem>>, %arg4: memref<8x128xf32, #tpu.memory_space<vmem>>) attributes {dimension_semantics = [#tpu.dimension_semantics<parallel>], iteration_bounds = array<i64: 1>, scalar_prefetch = 0 : i64, scratch_operands = 0 : i64, tpu.core_type = #tpu.core_type<tc>, window_params = [{pipeline_mode = #tpu.pipeline_mode<synchronous>, transform_indices = @transform_0, window_bounds = array<i64: 8, 64>}, {transform_indices = @transform_1, window_bounds = array<i64: 64, 128>}, {pipeline_mode = #tpu.pipeline_mode<synchronous>, transform_indices = @transform_2, window_bounds = array<i64: 8, 1>}, {transform_indices = @transform_3, window_bounds = array<i64: 8, 128>}]} {
    %c0 = arith.constant 0 : index
    %c0_0 = arith.constant 0 : index
    %0 = vector.load %arg1[%c0, %c0_0] : memref<8x64xf32, #tpu.memory_space<vmem>>, vector<8x64xf32>
    %c0_1 = arith.constant 0 : index
    %c0_2 = arith.constant 0 : index
    %1 = vector.load %arg2[%c0_1, %c0_2] : memref<64x128xf32, #tpu.memory_space<vmem>>, vector<64x128xf32>
    %cst = arith.constant dense<0.000000e+00> : vector<8x128xf32>
    %2 = tpu.matmul %0, %1, %cst {dimension_numbers = #tpu.dot_dimension_numbers<[1], [0], [0], [1], [0, 0, 1, 1], [], []>} : vector<8x64xf32>, vector<64x128xf32>, vector<8x128xf32> -> vector<8x128xf32>
    %c0_3 = arith.constant 0 : index
    %c0_4 = arith.constant 0 : index
    %3 = vector.load %arg3[%c0_3, %c0_4] : memref<8x1xf32, #tpu.memory_space<vmem>>, vector<8x1xf32>
    %4 = vector.broadcast %3 : vector<8x1xf32> to vector<8x128xf32>
    %5 = arith.addf %2, %4 : vector<8x128xf32>
    %c0_5 = arith.constant 0 : index
    %c0_6 = arith.constant 0 : index
    %6 = vector.load %arg4[%c0_5, %c0_6] : memref<8x128xf32, #tpu.memory_space<vmem>>, vector<8x128xf32>
    tpu.vector_store %arg4[%c0_5, %c0_6], %5 {strides = array<i32>} : memref<8x128xf32, #tpu.memory_space<vmem>>, vector<8x128xf32>,
    return
  }
  func.func @transform_0(%arg0: i32) -> (i32, i32) {
    %c0_i32 = arith.constant 0 : i32
    %c0_i32_0 = arith.constant 0 : i32
    %c0_i32_1 = arith.constant 0 : i32
    return %c0_i32, %c0_i32_0 : i32, i32
  }
  func.func @transform_1(%arg0: i32) -> (i32, i32) {
    %c0_i32 = arith.constant 0 : i32
    %c0_i32_0 = arith.constant 0 : i32
    return %c0_i32, %arg0 : i32, i32
  }
  func.func @transform_2(%arg0: i32) -> (i32, i32) {
    %c0_i32 = arith.constant 0 : i32
    %c0_i32_0 = arith.constant 0 : i32
    %c0_i32_1 = arith.constant 0 : i32
    return %c0_i32, %c0_i32_0 : i32, i32
  }
  func.func @transform_3(%arg0: i32) -> (i32, i32) {
    %c0_i32 = arith.constant 0 : i32
    %c0_i32_0 = arith.constant 0 : i32
    return %c0_i32, %arg0 : i32, i32
  }
}

module attributes {stable_mosaic.version = 11 : i64} {
  func.func @kernel(%arg0: i32, %arg1: memref<68x128xf32, #tpu.memory_space<vmem>>, %arg2: memref<68x128xf32, #tpu.memory_space<vmem>>, %arg3: memref<64x4xf32, #tpu.memory_space<vmem>>, %arg4: memref<64x4xf32, #tpu.memory_space<vmem>>, %arg5: memref<16x16xf32, #tpu.memory_space<vmem>>, %arg6: memref<16x16xf32, #tpu.memory_space<vmem>>, %arg7: memref<4x16xf32, #tpu.memory_space<vmem>>, %arg8: memref<4x128xf32, #tpu.memory_space<vmem>>) attributes {dimension_semantics = [#tpu.dimension_semantics<parallel>], iteration_bounds = array<i64: 1>, scalar_prefetch = 0 : i64, scratch_operands = 0 : i64, tpu.core_type = #tpu.core_type<tc>, window_params = [{transform_indices = @transform_0, window_bounds = array<i64: 68, 128>}, {transform_indices = @transform_1, window_bounds = array<i64: 68, 128>}, {pipeline_mode = #tpu.pipeline_mode<synchronous>, transform_indices = @transform_2, window_bounds = array<i64: 64, 4>}, {pipeline_mode = #tpu.pipeline_mode<synchronous>, transform_indices = @transform_3, window_bounds = array<i64: 64, 4>}, {pipeline_mode = #tpu.pipeline_mode<synchronous>, transform_indices = @transform_4, window_bounds = array<i64: 16, 16>}, {pipeline_mode = #tpu.pipeline_mode<synchronous>, transform_indices = @transform_5, window_bounds = array<i64: 16, 16>}, {pipeline_mode = #tpu.pipeline_mode<synchronous>, transform_indices = @transform_6, window_bounds = array<i64: 4, 16>}, {transform_indices = @transform_7, window_bounds = array<i64: 4, 128>}]} {
    %cst = arith.constant 0.707106769 : f32
    %0 = vector.broadcast %cst : f32 to vector<4x128xf32>
    %cst_0 = arith.constant 0.707106769 : f32
    %1 = vector.broadcast %cst_0 : f32 to vector<4x128xf32>
    %cst_1 = arith.constant 0.000000e+00 : f32
    %2 = vector.broadcast %cst_1 : f32 to vector<4x128xf32>
    %cst_2 = arith.constant 0.000000e+00 : f32
    %3 = vector.broadcast %cst_2 : f32 to vector<4x128xf32>
    %c0 = arith.constant 0 : index
    %c0_3 = arith.constant 0 : index
    %4 = vector.load %arg1[%c0, %c0_3] : memref<68x128xf32, #tpu.memory_space<vmem>>, vector<4x128xf32>
    %c0_4 = arith.constant 0 : index
    %c0_5 = arith.constant 0 : index
    %5 = vector.load %arg2[%c0_4, %c0_5] : memref<68x128xf32, #tpu.memory_space<vmem>>, vector<4x128xf32>
    %6 = arith.mulf %4, %0 : vector<4x128xf32>
    %7 = arith.mulf %5, %2 : vector<4x128xf32>
    %8 = arith.addf %6, %7 : vector<4x128xf32>
    %9 = arith.mulf %4, %2 : vector<4x128xf32>
    %10 = arith.mulf %5, %0 : vector<4x128xf32>
    %11 = arith.subf %9, %10 : vector<4x128xf32>
    %12 = arith.mulf %4, %1 : vector<4x128xf32>
    %13 = arith.mulf %5, %3 : vector<4x128xf32>
    %14 = arith.subf %12, %13 : vector<4x128xf32>
    %15 = arith.mulf %4, %3 : vector<4x128xf32>
    %16 = arith.mulf %5, %1 : vector<4x128xf32>
    %17 = arith.addf %15, %16 : vector<4x128xf32>
    %c4 = arith.constant 4 : index
    %c0_6 = arith.constant 0 : index
    %18 = vector.load %arg1[%c4, %c0_6] : memref<68x128xf32, #tpu.memory_space<vmem>>, vector<4x128xf32>
    %c4_7 = arith.constant 4 : index
    %c0_8 = arith.constant 0 : index
    %19 = vector.load %arg2[%c4_7, %c0_8] : memref<68x128xf32, #tpu.memory_space<vmem>>, vector<4x128xf32>
    %20 = arith.mulf %18, %8 : vector<4x128xf32>
    %21 = arith.mulf %19, %14 : vector<4x128xf32>
    %22 = arith.subf %20, %21 : vector<4x128xf32>
    %23 = arith.mulf %19, %8 : vector<4x128xf32>
    %24 = arith.mulf %18, %14 : vector<4x128xf32>
    %25 = arith.addf %23, %24 : vector<4x128xf32>
    %26 = arith.mulf %18, %11 : vector<4x128xf32>
    %27 = arith.mulf %19, %17 : vector<4x128xf32>
    %28 = arith.subf %26, %27 : vector<4x128xf32>
    %29 = arith.mulf %19, %11 : vector<4x128xf32>
    %30 = arith.mulf %18, %17 : vector<4x128xf32>
    %31 = arith.addf %29, %30 : vector<4x128xf32>
    %c8 = arith.constant 8 : index
    %c0_9 = arith.constant 0 : index
    %32 = vector.load %arg1[%c8, %c0_9] : memref<68x128xf32, #tpu.memory_space<vmem>>, vector<4x128xf32>
    %c8_10 = arith.constant 8 : index
    %c0_11 = arith.constant 0 : index
    %33 = vector.load %arg2[%c8_10, %c0_11] : memref<68x128xf32, #tpu.memory_space<vmem>>, vector<4x128xf32>
    %34 = arith.mulf %32, %22 : vector<4x128xf32>
    %35 = arith.mulf %33, %28 : vector<4x128xf32>
    %36 = arith.addf %34, %35 : vector<4x128xf32>
    %37 = arith.mulf %32, %28 : vector<4x128xf32>
    %38 = arith.mulf %33, %22 : vector<4x128xf32>
    %39 = arith.subf %37, %38 : vector<4x128xf32>
    %40 = arith.mulf %32, %25 : vector<4x128xf32>
    %41 = arith.mulf %33, %31 : vector<4x128xf32>
    %42 = arith.subf %40, %41 : vector<4x128xf32>
    %43 = arith.mulf %32, %31 : vector<4x128xf32>
    %44 = arith.mulf %33, %25 : vector<4x128xf32>
    %45 = arith.addf %43, %44 : vector<4x128xf32>
    %c12 = arith.constant 12 : index
    %c0_12 = arith.constant 0 : index
    %46 = vector.load %arg1[%c12, %c0_12] : memref<68x128xf32, #tpu.memory_space<vmem>>, vector<4x128xf32>
    %c12_13 = arith.constant 12 : index
    %c0_14 = arith.constant 0 : index
    %47 = vector.load %arg2[%c12_13, %c0_14] : memref<68x128xf32, #tpu.memory_space<vmem>>, vector<4x128xf32>
    %48 = arith.mulf %46, %36 : vector<4x128xf32>
    %49 = arith.mulf %47, %42 : vector<4x128xf32>
    %50 = arith.subf %48, %49 : vector<4x128xf32>
    %51 = arith.mulf %47, %36 : vector<4x128xf32>
    %52 = arith.mulf %46, %42 : vector<4x128xf32>
    %53 = arith.addf %51, %52 : vector<4x128xf32>
    %54 = arith.mulf %46, %39 : vector<4x128xf32>
    %55 = arith.mulf %47, %45 : vector<4x128xf32>
    %56 = arith.subf %54, %55 : vector<4x128xf32>
    %57 = arith.mulf %47, %39 : vector<4x128xf32>
    %58 = arith.mulf %46, %45 : vector<4x128xf32>
    %59 = arith.addf %57, %58 : vector<4x128xf32>
    %c16 = arith.constant 16 : index
    %c0_15 = arith.constant 0 : index
    %60 = vector.load %arg1[%c16, %c0_15] : memref<68x128xf32, #tpu.memory_space<vmem>>, vector<4x128xf32>
    %c16_16 = arith.constant 16 : index
    %c0_17 = arith.constant 0 : index
    %61 = vector.load %arg2[%c16_16, %c0_17] : memref<68x128xf32, #tpu.memory_space<vmem>>, vector<4x128xf32>
    %62 = arith.mulf %60, %50 : vector<4x128xf32>
    %63 = arith.mulf %61, %56 : vector<4x128xf32>
    %64 = arith.addf %62, %63 : vector<4x128xf32>
    %65 = arith.mulf %60, %56 : vector<4x128xf32>
    %66 = arith.mulf %61, %50 : vector<4x128xf32>
    %67 = arith.subf %65, %66 : vector<4x128xf32>
    %68 = arith.mulf %60, %53 : vector<4x128xf32>
    %69 = arith.mulf %61, %59 : vector<4x128xf32>
    %70 = arith.subf %68, %69 : vector<4x128xf32>
    %71 = arith.mulf %60, %59 : vector<4x128xf32>
    %72 = arith.mulf %61, %53 : vector<4x128xf32>
    %73 = arith.addf %71, %72 : vector<4x128xf32>
    %c20 = arith.constant 20 : index
    %c0_18 = arith.constant 0 : index
    %74 = vector.load %arg1[%c20, %c0_18] : memref<68x128xf32, #tpu.memory_space<vmem>>, vector<4x128xf32>
    %c20_19 = arith.constant 20 : index
    %c0_20 = arith.constant 0 : index
    %75 = vector.load %arg2[%c20_19, %c0_20] : memref<68x128xf32, #tpu.memory_space<vmem>>, vector<4x128xf32>
    %76 = arith.mulf %74, %64 : vector<4x128xf32>
    %77 = arith.mulf %75, %70 : vector<4x128xf32>
    %78 = arith.subf %76, %77 : vector<4x128xf32>
    %79 = arith.mulf %75, %64 : vector<4x128xf32>
    %80 = arith.mulf %74, %70 : vector<4x128xf32>
    %81 = arith.addf %79, %80 : vector<4x128xf32>
    %82 = arith.mulf %74, %67 : vector<4x128xf32>
    %83 = arith.mulf %75, %73 : vector<4x128xf32>
    %84 = arith.subf %82, %83 : vector<4x128xf32>
    %85 = arith.mulf %75, %67 : vector<4x128xf32>
    %86 = arith.mulf %74, %73 : vector<4x128xf32>
    %87 = arith.addf %85, %86 : vector<4x128xf32>
    %c24 = arith.constant 24 : index
    %c0_21 = arith.constant 0 : index
    %88 = vector.load %arg1[%c24, %c0_21] : memref<68x128xf32, #tpu.memory_space<vmem>>, vector<4x128xf32>
    %c24_22 = arith.constant 24 : index
    %c0_23 = arith.constant 0 : index
    %89 = vector.load %arg2[%c24_22, %c0_23] : memref<68x128xf32, #tpu.memory_space<vmem>>, vector<4x128xf32>
    %90 = arith.mulf %88, %78 : vector<4x128xf32>
    %91 = arith.mulf %89, %84 : vector<4x128xf32>
    %92 = arith.addf %90, %91 : vector<4x128xf32>
    %93 = arith.mulf %88, %84 : vector<4x128xf32>
    %94 = arith.mulf %89, %78 : vector<4x128xf32>
    %95 = arith.subf %93, %94 : vector<4x128xf32>
    %96 = arith.mulf %88, %81 : vector<4x128xf32>
    %97 = arith.mulf %89, %87 : vector<4x128xf32>
    %98 = arith.subf %96, %97 : vector<4x128xf32>
    %99 = arith.mulf %88, %87 : vector<4x128xf32>
    %100 = arith.mulf %89, %81 : vector<4x128xf32>
    %101 = arith.addf %99, %100 : vector<4x128xf32>
    %c28 = arith.constant 28 : index
    %c0_24 = arith.constant 0 : index
    %102 = vector.load %arg1[%c28, %c0_24] : memref<68x128xf32, #tpu.memory_space<vmem>>, vector<4x128xf32>
    %c28_25 = arith.constant 28 : index
    %c0_26 = arith.constant 0 : index
    %103 = vector.load %arg2[%c28_25, %c0_26] : memref<68x128xf32, #tpu.memory_space<vmem>>, vector<4x128xf32>
    %104 = arith.mulf %102, %92 : vector<4x128xf32>
    %105 = arith.mulf %103, %98 : vector<4x128xf32>
    %106 = arith.subf %104, %105 : vector<4x128xf32>
    %107 = arith.mulf %103, %92 : vector<4x128xf32>
    %108 = arith.mulf %102, %98 : vector<4x128xf32>
    %109 = arith.addf %107, %108 : vector<4x128xf32>
    %110 = arith.mulf %102, %95 : vector<4x128xf32>
    %111 = arith.mulf %103, %101 : vector<4x128xf32>
    %112 = arith.subf %110, %111 : vector<4x128xf32>
    %113 = arith.mulf %103, %95 : vector<4x128xf32>
    %114 = arith.mulf %102, %101 : vector<4x128xf32>
    %115 = arith.addf %113, %114 : vector<4x128xf32>
    %c32 = arith.constant 32 : index
    %c0_27 = arith.constant 0 : index
    %116 = vector.load %arg1[%c32, %c0_27] : memref<68x128xf32, #tpu.memory_space<vmem>>, vector<4x128xf32>
    %c32_28 = arith.constant 32 : index
    %c0_29 = arith.constant 0 : index
    %117 = vector.load %arg2[%c32_28, %c0_29] : memref<68x128xf32, #tpu.memory_space<vmem>>, vector<4x128xf32>
    %118 = arith.mulf %116, %106 : vector<4x128xf32>
    %119 = arith.mulf %117, %112 : vector<4x128xf32>
    %120 = arith.addf %118, %119 : vector<4x128xf32>
    %121 = arith.mulf %116, %112 : vector<4x128xf32>
    %122 = arith.mulf %117, %106 : vector<4x128xf32>
    %123 = arith.subf %121, %122 : vector<4x128xf32>
    %124 = arith.mulf %116, %109 : vector<4x128xf32>
    %125 = arith.mulf %117, %115 : vector<4x128xf32>
    %126 = arith.subf %124, %125 : vector<4x128xf32>
    %127 = arith.mulf %116, %115 : vector<4x128xf32>
    %128 = arith.mulf %117, %109 : vector<4x128xf32>
    %129 = arith.addf %127, %128 : vector<4x128xf32>
    %c36 = arith.constant 36 : index
    %c0_30 = arith.constant 0 : index
    %130 = vector.load %arg1[%c36, %c0_30] : memref<68x128xf32, #tpu.memory_space<vmem>>, vector<4x128xf32>
    %c36_31 = arith.constant 36 : index
    %c0_32 = arith.constant 0 : index
    %131 = vector.load %arg2[%c36_31, %c0_32] : memref<68x128xf32, #tpu.memory_space<vmem>>, vector<4x128xf32>
    %132 = arith.mulf %130, %120 : vector<4x128xf32>
    %133 = arith.mulf %131, %126 : vector<4x128xf32>
    %134 = arith.subf %132, %133 : vector<4x128xf32>
    %135 = arith.mulf %131, %120 : vector<4x128xf32>
    %136 = arith.mulf %130, %126 : vector<4x128xf32>
    %137 = arith.addf %135, %136 : vector<4x128xf32>
    %138 = arith.mulf %130, %123 : vector<4x128xf32>
    %139 = arith.mulf %131, %129 : vector<4x128xf32>
    %140 = arith.subf %138, %139 : vector<4x128xf32>
    %141 = arith.mulf %131, %123 : vector<4x128xf32>
    %142 = arith.mulf %130, %129 : vector<4x128xf32>
    %143 = arith.addf %141, %142 : vector<4x128xf32>
    %c40 = arith.constant 40 : index
    %c0_33 = arith.constant 0 : index
    %144 = vector.load %arg1[%c40, %c0_33] : memref<68x128xf32, #tpu.memory_space<vmem>>, vector<4x128xf32>
    %c40_34 = arith.constant 40 : index
    %c0_35 = arith.constant 0 : index
    %145 = vector.load %arg2[%c40_34, %c0_35] : memref<68x128xf32, #tpu.memory_space<vmem>>, vector<4x128xf32>
    %146 = arith.mulf %144, %134 : vector<4x128xf32>
    %147 = arith.mulf %145, %140 : vector<4x128xf32>
    %148 = arith.addf %146, %147 : vector<4x128xf32>
    %149 = arith.mulf %144, %140 : vector<4x128xf32>
    %150 = arith.mulf %145, %134 : vector<4x128xf32>
    %151 = arith.subf %149, %150 : vector<4x128xf32>
    %152 = arith.mulf %144, %137 : vector<4x128xf32>
    %153 = arith.mulf %145, %143 : vector<4x128xf32>
    %154 = arith.subf %152, %153 : vector<4x128xf32>
    %155 = arith.mulf %144, %143 : vector<4x128xf32>
    %156 = arith.mulf %145, %137 : vector<4x128xf32>
    %157 = arith.addf %155, %156 : vector<4x128xf32>
    %c44 = arith.constant 44 : index
    %c0_36 = arith.constant 0 : index
    %158 = vector.load %arg1[%c44, %c0_36] : memref<68x128xf32, #tpu.memory_space<vmem>>, vector<4x128xf32>
    %c44_37 = arith.constant 44 : index
    %c0_38 = arith.constant 0 : index
    %159 = vector.load %arg2[%c44_37, %c0_38] : memref<68x128xf32, #tpu.memory_space<vmem>>, vector<4x128xf32>
    %160 = arith.mulf %158, %148 : vector<4x128xf32>
    %161 = arith.mulf %159, %154 : vector<4x128xf32>
    %162 = arith.subf %160, %161 : vector<4x128xf32>
    %163 = arith.mulf %159, %148 : vector<4x128xf32>
    %164 = arith.mulf %158, %154 : vector<4x128xf32>
    %165 = arith.addf %163, %164 : vector<4x128xf32>
    %166 = arith.mulf %158, %151 : vector<4x128xf32>
    %167 = arith.mulf %159, %157 : vector<4x128xf32>
    %168 = arith.subf %166, %167 : vector<4x128xf32>
    %169 = arith.mulf %159, %151 : vector<4x128xf32>
    %170 = arith.mulf %158, %157 : vector<4x128xf32>
    %171 = arith.addf %169, %170 : vector<4x128xf32>
    %c48 = arith.constant 48 : index
    %c0_39 = arith.constant 0 : index
    %172 = vector.load %arg1[%c48, %c0_39] : memref<68x128xf32, #tpu.memory_space<vmem>>, vector<4x128xf32>
    %c48_40 = arith.constant 48 : index
    %c0_41 = arith.constant 0 : index
    %173 = vector.load %arg2[%c48_40, %c0_41] : memref<68x128xf32, #tpu.memory_space<vmem>>, vector<4x128xf32>
    %174 = arith.mulf %172, %162 : vector<4x128xf32>
    %175 = arith.mulf %173, %168 : vector<4x128xf32>
    %176 = arith.addf %174, %175 : vector<4x128xf32>
    %177 = arith.mulf %172, %168 : vector<4x128xf32>
    %178 = arith.mulf %173, %162 : vector<4x128xf32>
    %179 = arith.subf %177, %178 : vector<4x128xf32>
    %180 = arith.mulf %172, %165 : vector<4x128xf32>
    %181 = arith.mulf %173, %171 : vector<4x128xf32>
    %182 = arith.subf %180, %181 : vector<4x128xf32>
    %183 = arith.mulf %172, %171 : vector<4x128xf32>
    %184 = arith.mulf %173, %165 : vector<4x128xf32>
    %185 = arith.addf %183, %184 : vector<4x128xf32>
    %c52 = arith.constant 52 : index
    %c0_42 = arith.constant 0 : index
    %186 = vector.load %arg1[%c52, %c0_42] : memref<68x128xf32, #tpu.memory_space<vmem>>, vector<4x128xf32>
    %c52_43 = arith.constant 52 : index
    %c0_44 = arith.constant 0 : index
    %187 = vector.load %arg2[%c52_43, %c0_44] : memref<68x128xf32, #tpu.memory_space<vmem>>, vector<4x128xf32>
    %188 = arith.mulf %186, %176 : vector<4x128xf32>
    %189 = arith.mulf %187, %182 : vector<4x128xf32>
    %190 = arith.subf %188, %189 : vector<4x128xf32>
    %191 = arith.mulf %187, %176 : vector<4x128xf32>
    %192 = arith.mulf %186, %182 : vector<4x128xf32>
    %193 = arith.addf %191, %192 : vector<4x128xf32>
    %194 = arith.mulf %186, %179 : vector<4x128xf32>
    %195 = arith.mulf %187, %185 : vector<4x128xf32>
    %196 = arith.subf %194, %195 : vector<4x128xf32>
    %197 = arith.mulf %187, %179 : vector<4x128xf32>
    %198 = arith.mulf %186, %185 : vector<4x128xf32>
    %199 = arith.addf %197, %198 : vector<4x128xf32>
    %c56 = arith.constant 56 : index
    %c0_45 = arith.constant 0 : index
    %200 = vector.load %arg1[%c56, %c0_45] : memref<68x128xf32, #tpu.memory_space<vmem>>, vector<4x128xf32>
    %c56_46 = arith.constant 56 : index
    %c0_47 = arith.constant 0 : index
    %201 = vector.load %arg2[%c56_46, %c0_47] : memref<68x128xf32, #tpu.memory_space<vmem>>, vector<4x128xf32>
    %202 = arith.mulf %200, %190 : vector<4x128xf32>
    %203 = arith.mulf %201, %196 : vector<4x128xf32>
    %204 = arith.addf %202, %203 : vector<4x128xf32>
    %205 = arith.mulf %200, %196 : vector<4x128xf32>
    %206 = arith.mulf %201, %190 : vector<4x128xf32>
    %207 = arith.subf %205, %206 : vector<4x128xf32>
    %208 = arith.mulf %200, %193 : vector<4x128xf32>
    %209 = arith.mulf %201, %199 : vector<4x128xf32>
    %210 = arith.subf %208, %209 : vector<4x128xf32>
    %211 = arith.mulf %200, %199 : vector<4x128xf32>
    %212 = arith.mulf %201, %193 : vector<4x128xf32>
    %213 = arith.addf %211, %212 : vector<4x128xf32>
    %c60 = arith.constant 60 : index
    %c0_48 = arith.constant 0 : index
    %214 = vector.load %arg1[%c60, %c0_48] : memref<68x128xf32, #tpu.memory_space<vmem>>, vector<4x128xf32>
    %c60_49 = arith.constant 60 : index
    %c0_50 = arith.constant 0 : index
    %215 = vector.load %arg2[%c60_49, %c0_50] : memref<68x128xf32, #tpu.memory_space<vmem>>, vector<4x128xf32>
    %216 = arith.mulf %214, %204 : vector<4x128xf32>
    %217 = arith.mulf %215, %210 : vector<4x128xf32>
    %218 = arith.subf %216, %217 : vector<4x128xf32>
    %219 = arith.mulf %215, %204 : vector<4x128xf32>
    %220 = arith.mulf %214, %210 : vector<4x128xf32>
    %221 = arith.addf %219, %220 : vector<4x128xf32>
    %222 = arith.mulf %214, %207 : vector<4x128xf32>
    %223 = arith.mulf %215, %213 : vector<4x128xf32>
    %224 = arith.subf %222, %223 : vector<4x128xf32>
    %225 = arith.mulf %215, %207 : vector<4x128xf32>
    %226 = arith.mulf %214, %213 : vector<4x128xf32>
    %227 = arith.addf %225, %226 : vector<4x128xf32>
    %c64 = arith.constant 64 : index
    %c0_51 = arith.constant 0 : index
    %228 = vector.load %arg1[%c64, %c0_51] : memref<68x128xf32, #tpu.memory_space<vmem>>, vector<4x128xf32>
    %c64_52 = arith.constant 64 : index
    %c0_53 = arith.constant 0 : index
    %229 = vector.load %arg2[%c64_52, %c0_53] : memref<68x128xf32, #tpu.memory_space<vmem>>, vector<4x128xf32>
    %230 = arith.mulf %228, %218 : vector<4x128xf32>
    %231 = arith.mulf %229, %224 : vector<4x128xf32>
    %232 = arith.addf %230, %231 : vector<4x128xf32>
    %233 = arith.mulf %228, %224 : vector<4x128xf32>
    %234 = arith.mulf %229, %218 : vector<4x128xf32>
    %235 = arith.subf %233, %234 : vector<4x128xf32>
    %236 = arith.mulf %228, %221 : vector<4x128xf32>
    %237 = arith.mulf %229, %227 : vector<4x128xf32>
    %238 = arith.subf %236, %237 : vector<4x128xf32>
    %239 = arith.mulf %228, %227 : vector<4x128xf32>
    %240 = arith.mulf %229, %221 : vector<4x128xf32>
    %241 = arith.addf %239, %240 : vector<4x128xf32>
    %c0_54 = arith.constant 0 : index
    %c0_55 = arith.constant 0 : index
    %242 = vector.load %arg3[%c0_54, %c0_55] : memref<64x4xf32, #tpu.memory_space<vmem>>, vector<64x4xf32>
    %cst_56 = arith.constant dense<0.000000e+00> : vector<64x128xf32>
    %243 = tpu.matmul %242, %232, %cst_56 {dimension_numbers = #tpu.dot_dimension_numbers<[1], [0], [0], [1], [0, 0, 1, 1], [], []>} : vector<64x4xf32>, vector<4x128xf32>, vector<64x128xf32> -> vector<64x128xf32>
    %c0_57 = arith.constant 0 : index
    %c0_58 = arith.constant 0 : index
    %244 = vector.load %arg4[%c0_57, %c0_58] : memref<64x4xf32, #tpu.memory_space<vmem>>, vector<64x4xf32>
    %cst_59 = arith.constant dense<0.000000e+00> : vector<64x128xf32>
    %245 = tpu.matmul %244, %238, %cst_59 {dimension_numbers = #tpu.dot_dimension_numbers<[1], [0], [0], [1], [0, 0, 1, 1], [], []>} : vector<64x4xf32>, vector<4x128xf32>, vector<64x128xf32> -> vector<64x128xf32>
    %246 = arith.addf %243, %245 : vector<64x128xf32>
    %c0_60 = arith.constant 0 : index
    %c0_61 = arith.constant 0 : index
    %247 = vector.load %arg3[%c0_60, %c0_61] : memref<64x4xf32, #tpu.memory_space<vmem>>, vector<64x4xf32>
    %cst_62 = arith.constant dense<0.000000e+00> : vector<64x128xf32>
    %248 = tpu.matmul %247, %235, %cst_62 {dimension_numbers = #tpu.dot_dimension_numbers<[1], [0], [0], [1], [0, 0, 1, 1], [], []>} : vector<64x4xf32>, vector<4x128xf32>, vector<64x128xf32> -> vector<64x128xf32>
    %c0_63 = arith.constant 0 : index
    %c0_64 = arith.constant 0 : index
    %249 = vector.load %arg4[%c0_63, %c0_64] : memref<64x4xf32, #tpu.memory_space<vmem>>, vector<64x4xf32>
    %cst_65 = arith.constant dense<0.000000e+00> : vector<64x128xf32>
    %250 = tpu.matmul %249, %241, %cst_65 {dimension_numbers = #tpu.dot_dimension_numbers<[1], [0], [0], [1], [0, 0, 1, 1], [], []>} : vector<64x4xf32>, vector<4x128xf32>, vector<64x128xf32> -> vector<64x128xf32>
    %251 = arith.addf %248, %250 : vector<64x128xf32>
    %252 = vector.extract_strided_slice %246 {offsets = [0, 0], sizes = [16, 128], strides = [1, 1]} : vector<64x128xf32> to vector<16x128xf32>
    %253 = vector.extract_strided_slice %246 {offsets = [16, 0], sizes = [16, 128], strides = [1, 1]} : vector<64x128xf32> to vector<16x128xf32>
    %254 = vector.extract_strided_slice %246 {offsets = [32, 0], sizes = [16, 128], strides = [1, 1]} : vector<64x128xf32> to vector<16x128xf32>
    %255 = vector.extract_strided_slice %246 {offsets = [48, 0], sizes = [16, 128], strides = [1, 1]} : vector<64x128xf32> to vector<16x128xf32>
    %256 = vector.extract_strided_slice %251 {offsets = [0, 0], sizes = [16, 128], strides = [1, 1]} : vector<64x128xf32> to vector<16x128xf32>
    %257 = vector.extract_strided_slice %251 {offsets = [16, 0], sizes = [16, 128], strides = [1, 1]} : vector<64x128xf32> to vector<16x128xf32>
    %258 = vector.extract_strided_slice %251 {offsets = [32, 0], sizes = [16, 128], strides = [1, 1]} : vector<64x128xf32> to vector<16x128xf32>
    %259 = vector.extract_strided_slice %251 {offsets = [48, 0], sizes = [16, 128], strides = [1, 1]} : vector<64x128xf32> to vector<16x128xf32>
    %260 = arith.mulf %252, %253 : vector<16x128xf32>
    %261 = arith.mulf %256, %257 : vector<16x128xf32>
    %262 = arith.subf %260, %261 : vector<16x128xf32>
    %263 = arith.mulf %252, %257 : vector<16x128xf32>
    %264 = arith.mulf %256, %253 : vector<16x128xf32>
    %265 = arith.addf %263, %264 : vector<16x128xf32>
    %266 = arith.mulf %254, %255 : vector<16x128xf32>
    %267 = arith.mulf %258, %259 : vector<16x128xf32>
    %268 = arith.subf %266, %267 : vector<16x128xf32>
    %269 = arith.mulf %254, %259 : vector<16x128xf32>
    %270 = arith.mulf %258, %255 : vector<16x128xf32>
    %271 = arith.addf %269, %270 : vector<16x128xf32>
    %272 = arith.mulf %262, %268 : vector<16x128xf32>
    %273 = arith.mulf %265, %271 : vector<16x128xf32>
    %274 = arith.subf %272, %273 : vector<16x128xf32>
    %275 = arith.mulf %262, %271 : vector<16x128xf32>
    %276 = arith.mulf %265, %268 : vector<16x128xf32>
    %277 = arith.addf %275, %276 : vector<16x128xf32>
    %c0_66 = arith.constant 0 : index
    %c0_67 = arith.constant 0 : index
    %278 = vector.load %arg5[%c0_66, %c0_67] : memref<16x16xf32, #tpu.memory_space<vmem>>, vector<16x16xf32>
    %c0_68 = arith.constant 0 : index
    %c0_69 = arith.constant 0 : index
    %279 = vector.load %arg6[%c0_68, %c0_69] : memref<16x16xf32, #tpu.memory_space<vmem>>, vector<16x16xf32>
    %cst_70 = arith.constant dense<0.000000e+00> : vector<16x128xf32>
    %280 = tpu.matmul %278, %274, %cst_70 {dimension_numbers = #tpu.dot_dimension_numbers<[1], [0], [0], [1], [0, 0, 1, 1], [], []>} : vector<16x16xf32>, vector<16x128xf32>, vector<16x128xf32> -> vector<16x128xf32>
    %cst_71 = arith.constant dense<0.000000e+00> : vector<16x128xf32>
    %281 = tpu.matmul %279, %277, %cst_71 {dimension_numbers = #tpu.dot_dimension_numbers<[1], [0], [0], [1], [0, 0, 1, 1], [], []>} : vector<16x16xf32>, vector<16x128xf32>, vector<16x128xf32> -> vector<16x128xf32>
    %282 = arith.subf %280, %281 : vector<16x128xf32>
    %cst_72 = arith.constant dense<0.000000e+00> : vector<16x128xf32>
    %283 = tpu.matmul %278, %277, %cst_72 {dimension_numbers = #tpu.dot_dimension_numbers<[1], [0], [0], [1], [0, 0, 1, 1], [], []>} : vector<16x16xf32>, vector<16x128xf32>, vector<16x128xf32> -> vector<16x128xf32>
    %cst_73 = arith.constant dense<0.000000e+00> : vector<16x128xf32>
    %284 = tpu.matmul %279, %274, %cst_73 {dimension_numbers = #tpu.dot_dimension_numbers<[1], [0], [0], [1], [0, 0, 1, 1], [], []>} : vector<16x16xf32>, vector<16x128xf32>, vector<16x128xf32> -> vector<16x128xf32>
    %285 = arith.addf %283, %284 : vector<16x128xf32>
    %286 = arith.mulf %282, %282 : vector<16x128xf32>
    %287 = arith.mulf %285, %285 : vector<16x128xf32>
    %288 = arith.addf %286, %287 : vector<16x128xf32>
    %c0_74 = arith.constant 0 : index
    %c0_75 = arith.constant 0 : index
    %289 = vector.load %arg7[%c0_74, %c0_75] : memref<4x16xf32, #tpu.memory_space<vmem>>, vector<4x16xf32>
    %cst_76 = arith.constant dense<0.000000e+00> : vector<4x128xf32>
    %290 = tpu.matmul %289, %288, %cst_76 {dimension_numbers = #tpu.dot_dimension_numbers<[1], [0], [0], [1], [0, 0, 1, 1], [], []>} : vector<4x16xf32>, vector<16x128xf32>, vector<4x128xf32> -> vector<4x128xf32>
    %c0_77 = arith.constant 0 : index
    %c0_78 = arith.constant 0 : index
    %291 = vector.load %arg8[%c0_77, %c0_78] : memref<4x128xf32, #tpu.memory_space<vmem>>, vector<4x128xf32>
    tpu.vector_store %arg8[%c0_77, %c0_78], %290 {strides = array<i32>} : memref<4x128xf32, #tpu.memory_space<vmem>>, vector<4x128xf32>,
    return
  }
  func.func @transform_0(%arg0: i32) -> (i32, i32) {
    %c0_i32 = arith.constant 0 : i32
    %c0_i32_0 = arith.constant 0 : i32
    return %c0_i32, %arg0 : i32, i32
  }
  func.func @transform_1(%arg0: i32) -> (i32, i32) {
    %c0_i32 = arith.constant 0 : i32
    %c0_i32_0 = arith.constant 0 : i32
    return %c0_i32, %arg0 : i32, i32
  }
  func.func @transform_2(%arg0: i32) -> (i32, i32) {
    %c0_i32 = arith.constant 0 : i32
    %c0_i32_0 = arith.constant 0 : i32
    %c0_i32_1 = arith.constant 0 : i32
    return %c0_i32, %c0_i32_0 : i32, i32
  }
  func.func @transform_3(%arg0: i32) -> (i32, i32) {
    %c0_i32 = arith.constant 0 : i32
    %c0_i32_0 = arith.constant 0 : i32
    %c0_i32_1 = arith.constant 0 : i32
    return %c0_i32, %c0_i32_0 : i32, i32
  }
  func.func @transform_4(%arg0: i32) -> (i32, i32) {
    %c0_i32 = arith.constant 0 : i32
    %c0_i32_0 = arith.constant 0 : i32
    %c0_i32_1 = arith.constant 0 : i32
    return %c0_i32, %c0_i32_0 : i32, i32
  }
  func.func @transform_5(%arg0: i32) -> (i32, i32) {
    %c0_i32 = arith.constant 0 : i32
    %c0_i32_0 = arith.constant 0 : i32
    %c0_i32_1 = arith.constant 0 : i32
    return %c0_i32, %c0_i32_0 : i32, i32
  }
  func.func @transform_6(%arg0: i32) -> (i32, i32) {
    %c0_i32 = arith.constant 0 : i32
    %c0_i32_0 = arith.constant 0 : i32
    %c0_i32_1 = arith.constant 0 : i32
    return %c0_i32, %c0_i32_0 : i32, i32
  }
  func.func @transform_7(%arg0: i32) -> (i32, i32) {
    %c0_i32 = arith.constant 0 : i32
    %c0_i32_0 = arith.constant 0 : i32
    return %c0_i32, %arg0 : i32, i32
  }
}

</mosaic_0001>

<llo_original>
// kernel: inception_forward.2
$region0: #{inception_forward.2}
  #allocation0 [shape = 'u32[]', space=smem, size = 0x4, offset = 0x4, fixed_abs, tag = 'smem constant byte address 0x4 - core index']
  #allocation1 [shape = 'u32[144,128]{1,0:T(1,128)}', space=vmem, size = 0x12000, scoped, tag = 'internal scratch']
  %s0 = inlined_call_operand.vmem [shape: f32[8,64], index: 0, kind: input, shape index: {}]
  %s1 = inlined_call_operand.vmem [shape: f32[64,128], index: 1, kind: input, shape index: {}]
  %s2 = inlined_call_operand.vmem [shape: f32[8,1], index: 2, kind: input, shape index: {}]
  %s3 = inlined_call_operand.vmem [shape: f32[8,128], index: 3, kind: output, shape index: {}]
  %s4 = sld [smem:[#allocation0]]
  $region22: #{inception_forward.2} parent=0
    _
  %s6 = ssub.s32 1, %s4
  %s7 = scalar_select 0, %s6, %s4
  // Predicated region
  $region2: #{inception_forward.2} parent=0 // pred_check
    _
  $region3: #{inception_forward.2} parent=0 // pred_check_branch
    %9 = sbr.rel (0) target = $region5
  $region4: #{inception_forward.2} parent=0 // pred_region
    _
  $region5: #{inception_forward.2} parent=0 // pred_fallthru
    _
  // Predicated region
  $region6: #{inception_forward.2} parent=0 // pred_check
    _
  $region7: #{inception_forward.2} parent=0 // pred_check_branch
    %11 = sbr.rel (0) target = $region9
  $region8: #{inception_forward.2} parent=0 // pred_region
    _
  $region9: #{inception_forward.2} parent=0 // pred_fallthru
    _
  // Predicated region
  $region10: #{inception_forward.2} parent=0 // pred_check
    _
  $region11: #{inception_forward.2} parent=0 // pred_check_branch
    %13 = sbr.rel (0) target = $region13
  $region12: #{inception_forward.2} parent=0 // pred_region
    _
  $region13: #{inception_forward.2} parent=0 // pred_fallthru
    _
  %v14 = vld [vmem:[%s0] sm:$0xff]
  %v15 = vld [vmem:[%s1] sm:$0xff]
  %v16 = vld [vmem:[%s1 + $0x8] sm:$0xff]
  %v17 = vld [vmem:[%s1 + $0x10] sm:$0xff]
  %v18 = vld [vmem:[%s1 + $0x18] sm:$0xff]
  %v19 = vld [vmem:[%s1 + $0x20] sm:$0xff]
  %v20 = vld [vmem:[%s1 + $0x28] sm:$0xff]
  %v21 = vld [vmem:[%s1 + $0x30] sm:$0xff]
  %v22 = vld [vmem:[%s1 + $0x38] sm:$0xff]
  %v23 = vld [vmem:[%s2] sm:$0xff]
  %25 = vset.pattern.permute.xlu0 0
  %26 = vperm.xlu0 %25, %v23
  %v27 = vpop.permute.xlu0 %26
  %vm29 = vcmask 523264
  %v31 = vsel %vm29, %v14, 0
  %33 = vmatprep.subr.mxu0 0.0
  %34 = vmatpush1.msra.mxu0 %v15
  %35 = vmatprep.subr.mxu0 0.0
  %36 = vmatpush1.msra.mxu0 %v16
  %37 = vmatprep.subr.mxu0 0.0
  %38 = vmatpush1.msra.mxu0 %v17
  %39 = vmatprep.subr.mxu0 0.0
  %40 = vmatpush1.msra.mxu0 %v18
  %41 = vmatprep.subr.mxu0 0.0
  %42 = vmatpush1.msra.mxu0 %v19
  %43 = vmatprep.subr.mxu0 0.0
  %44 = vmatpush1.msra.mxu0 %v20
  %45 = vmatprep.subr.mxu0 0.0
  %46 = vmatpush1.msra.mxu0 %v21
  %47 = vmatprep.subr.mxu0 0.0
  %48 = vmatpush1.msra.mxu0 %v22
  %49 = vmatprep.subr.mxu0 0.0
  %50 = vmatpush1.msra.mxu0 0.0
  %51 = vmatprep.subr.mxu0 0.0
  %52 = vmatpush1.msra.mxu0 0.0
  %53 = vmatprep.subr.mxu0 0.0
  %54 = vmatpush1.msra.mxu0 0.0
  %55 = vmatprep.subr.mxu0 0.0
  %56 = vmatpush1.msra.mxu0 0.0
  %57 = vmatprep.subr.mxu0 0.0
  %58 = vmatpush1.msra.mxu0 0.0
  %59 = vmatprep.subr.mxu0 0.0
  %60 = vmatpush1.msra.mxu0 0.0
  %61 = vmatprep.subr.mxu0 0.0
  %62 = vmatpush1.msra.mxu0 0.0
  %63 = vmatprep.subr.mxu0 0.0
  %64 = vmatpush1.msra.mxu0 0.0
  %65 = vmatprep.subr.mxu0 0.0
  %66 = vmatpush1.msra.mxu0 0.0
  %67 = vmatprep.subr.mxu0 0.0
  %68 = vmatpush1.msra.mxu0 0.0
  %69 = vmatprep.subr.mxu0 0.0
  %70 = vmatpush1.msra.mxu0 0.0
  %71 = vmatprep.subr.mxu0 0.0
  %72 = vmatpush1.msra.mxu0 0.0
  %73 = vmatprep.subr.mxu0 0.0
  %74 = vmatpush1.msra.mxu0 0.0
  %75 = vmatprep.subr.mxu0 0.0
  %76 = vmatpush1.msra.mxu0 0.0
  %77 = vmatprep.subr.mxu0 0.0
  %78 = vmatpush1.msra.mxu0 0.0
  %79 = vmatprep.subr.mxu0 0.0
  %80 = vmatpush1.msra.mxu0 0.0
  %81 = vmatprep.subr.mxu0 0.0
  %82 = vmatpush1.msra.mxu0 0.0
  %83 = vmatprep.subr.mxu0 0.0
  %84 = vmatpush1.msra.mxu0 0.0
  %85 = vmatprep.subr.mxu0 0.0
  %86 = vmatpush1.msra.mxu0 0.0
  %87 = vmatprep.subr.mxu0 0.0
  %88 = vmatpush1.msra.mxu0 0.0
  %89 = vmatprep.subr.mxu0 0.0
  %90 = vmatpush1.msra.mxu0 0.0
  %91 = vmatprep.subr.mxu0 0.0
  %92 = vmatpush1.msra.mxu0 0.0
  %93 = vmatprep.subr.mxu0 0.0
  %94 = vmatpush1.msra.mxu0 0.0
  %95 = vmatprep.subr.mxu0 0.0
  %96 = vmatpush1.msra.mxu0 0.0
  %97 = vmatprep.mubr.f32.mxu0 0.0
  %98 = vmatmul.mubr.f32.gmra.mrb[0].mxu0 %v31
  %v99 = vpop.f32.mrb[0].mxu0
  %v100 = vadd.f32 %v27, %v99
  %v101 = vpop.f32.mrb[0].mxu0
  %102 = vdwg.mxu0
  %103 = vst [vmem:[%s3] sm:$0xff] %v100
  // Predicated region
  $region14: #{inception_forward.2} parent=0 // pred_check
    _
  $region15: #{inception_forward.2} parent=0 // pred_check_branch
    %105 = sbr.rel (0) target = $region17
  $region16: #{inception_forward.2} parent=0 // pred_region
    _
  $region17: #{inception_forward.2} parent=0 // pred_fallthru
    _
  // Predicated region
  $region18: #{inception_forward.2} parent=0 // pred_check
    _
  $region19: #{inception_forward.2} parent=0 // pred_check_branch
    %107 = sbr.rel (0) target = $region21
  $region20: #{inception_forward.2} parent=0 // pred_region
    _
  $region21: #{inception_forward.2} parent=0 // pred_fallthru
    _

// kernel: inception_forward.3
$region0: #{inception_forward.3}
  #allocation0 [shape = 'u32[]', space=smem, size = 0x4, offset = 0x4, fixed_abs, tag = 'smem constant byte address 0x4 - core index']
  #allocation1 [shape = 'u32[144,128]{1,0:T(1,128)}', space=vmem, size = 0x12000, scoped, tag = 'internal scratch']
  %s0 = inlined_call_operand.vmem [shape: f32[68,128], index: 0, kind: input, shape index: {}]
  %s1 = inlined_call_operand.vmem [shape: f32[68,128], index: 1, kind: input, shape index: {}]
  %s2 = inlined_call_operand.vmem [shape: f32[64,4], index: 2, kind: input, shape index: {}]
  %s3 = inlined_call_operand.vmem [shape: f32[64,4], index: 3, kind: input, shape index: {}]
  %s4 = inlined_call_operand.vmem [shape: f32[16,16], index: 4, kind: input, shape index: {}]
  %s5 = inlined_call_operand.vmem [shape: f32[16,16], index: 5, kind: input, shape index: {}]
  %s6 = inlined_call_operand.vmem [shape: f32[4,16], index: 6, kind: input, shape index: {}]
  %s7 = inlined_call_operand.vmem [shape: f32[4,128], index: 7, kind: output, shape index: {}]
  %s8 = sld [smem:[#allocation0]]
  $region38: #{inception_forward.3} parent=0
    _
  %s10 = ssub.s32 1, %s8
  %s11 = scalar_select 0, %s10, %s8
  // Predicated region
  $region2: #{inception_forward.3} parent=0 // pred_check
    _
  $region3: #{inception_forward.3} parent=0 // pred_check_branch
    %13 = sbr.rel (0) target = $region5
  $region4: #{inception_forward.3} parent=0 // pred_region
    _
  $region5: #{inception_forward.3} parent=0 // pred_fallthru
    _
  // Predicated region
  $region6: #{inception_forward.3} parent=0 // pred_check
    _
  $region7: #{inception_forward.3} parent=0 // pred_check_branch
    %15 = sbr.rel (0) target = $region9
  $region8: #{inception_forward.3} parent=0 // pred_region
    _
  $region9: #{inception_forward.3} parent=0 // pred_fallthru
    _
  // Predicated region
  $region10: #{inception_forward.3} parent=0 // pred_check
    _
  $region11: #{inception_forward.3} parent=0 // pred_check_branch
    %17 = sbr.rel (0) target = $region13
  $region12: #{inception_forward.3} parent=0 // pred_region
    _
  $region13: #{inception_forward.3} parent=0 // pred_fallthru
    _
  // Predicated region
  $region14: #{inception_forward.3} parent=0 // pred_check
    _
  $region15: #{inception_forward.3} parent=0 // pred_check_branch
    %19 = sbr.rel (0) target = $region17
  $region16: #{inception_forward.3} parent=0 // pred_region
    _
  $region17: #{inception_forward.3} parent=0 // pred_fallthru
    _
  // Predicated region
  $region18: #{inception_forward.3} parent=0 // pred_check
    _
  $region19: #{inception_forward.3} parent=0 // pred_check_branch
    %21 = sbr.rel (0) target = $region21
  $region20: #{inception_forward.3} parent=0 // pred_region
    _
  $region21: #{inception_forward.3} parent=0 // pred_fallthru
    _
  // Predicated region
  $region22: #{inception_forward.3} parent=0 // pred_check
    _
  $region23: #{inception_forward.3} parent=0 // pred_check_branch
    %23 = sbr.rel (0) target = $region25
  $region24: #{inception_forward.3} parent=0 // pred_region
    _
  $region25: #{inception_forward.3} parent=0 // pred_fallthru
    _
  // Predicated region
  $region26: #{inception_forward.3} parent=0 // pred_check
    _
  $region27: #{inception_forward.3} parent=0 // pred_check_branch
    %25 = sbr.rel (0) target = $region29
  $region28: #{inception_forward.3} parent=0 // pred_region
    _
  $region29: #{inception_forward.3} parent=0 // pred_fallthru
    _
  %v26 = vld [vmem:[%s0] sm:$0xf]
  %v27 = vld [vmem:[%s1] sm:$0xf]
  %v28 = vmul.f32 %v26, 0.70710677
  %v29 = vmul.f32 %v27, 0.0
  %v30 = vadd.f32 %v28, %v29
  %v31 = vmul.f32 %v26, 0.0
  %v32 = vmul.f32 %v27, 0.70710677
  %v33 = vsub.f32 %v31, %v32
  %v34 = vsub.f32 %v28, %v29
  %v35 = vadd.f32 %v31, %v32
  %v36 = vld [vmem:[%s0 + $0x4] sm:$0xf]
  %v37 = vld [vmem:[%s1 + $0x4] sm:$0xf]
  %v38 = vmul.f32 %v36, %v30
  %v39 = vmul.f32 %v37, %v34
  %v40 = vsub.f32 %v38, %v39
  %v41 = vmul.f32 %v37, %v30
  %v42 = vmul.f32 %v36, %v34
  %v43 = vadd.f32 %v41, %v42
  %v44 = vmul.f32 %v36, %v33
  %v45 = vmul.f32 %v37, %v35
  %v46 = vsub.f32 %v44, %v45
  %v47 = vmul.f32 %v37, %v33
  %v48 = vmul.f32 %v36, %v35
  %v49 = vadd.f32 %v47, %v48
  %v50 = vld [vmem:[%s0 + $0x8] sm:$0xf]
  %v51 = vld [vmem:[%s1 + $0x8] sm:$0xf]
  %v52 = vmul.f32 %v50, %v40
  %v53 = vmul.f32 %v51, %v46
  %v54 = vadd.f32 %v52, %v53
  %v55 = vmul.f32 %v50, %v46
  %v56 = vmul.f32 %v51, %v40
  %v57 = vsub.f32 %v55, %v56
  %v58 = vmul.f32 %v50, %v43
  %v59 = vmul.f32 %v51, %v49
  %v60 = vsub.f32 %v58, %v59
  %v61 = vmul.f32 %v50, %v49
  %v62 = vmul.f32 %v51, %v43
  %v63 = vadd.f32 %v61, %v62
  %v64 = vld [vmem:[%s0 + $0xc] sm:$0xf]
  %v65 = vld [vmem:[%s1 + $0xc] sm:$0xf]
  %v66 = vmul.f32 %v64, %v54
  %v67 = vmul.f32 %v65, %v60
  %v68 = vsub.f32 %v66, %v67
  %v69 = vmul.f32 %v65, %v54
  %v70 = vmul.f32 %v64, %v60
  %v71 = vadd.f32 %v69, %v70
  %v72 = vmul.f32 %v64, %v57
  %v73 = vmul.f32 %v65, %v63
  %v74 = vsub.f32 %v72, %v73
  %v75 = vmul.f32 %v65, %v57
  %v76 = vmul.f32 %v64, %v63
  %v77 = vadd.f32 %v75, %v76
  %v78 = vld [vmem:[%s0 + $0x10] sm:$0xf]
  %v79 = vld [vmem:[%s1 + $0x10] sm:$0xf]
  %v80 = vmul.f32 %v78, %v68
  %v81 = vmul.f32 %v79, %v74
  %v82 = vadd.f32 %v80, %v81
  %v83 = vmul.f32 %v78, %v74
  %v84 = vmul.f32 %v79, %v68
  %v85 = vsub.f32 %v83, %v84
  %v86 = vmul.f32 %v78, %v71
  %v87 = vmul.f32 %v79, %v77
  %v88 = vsub.f32 %v86, %v87
  %v89 = vmul.f32 %v78, %v77
  %v90 = vmul.f32 %v79, %v71
  %v91 = vadd.f32 %v89, %v90
  %v92 = vld [vmem:[%s0 + $0x14] sm:$0xf]
  %v93 = vld [vmem:[%s1 + $0x14] sm:$0xf]
  %v94 = vmul.f32 %v92, %v82
  %v95 = vmul.f32 %v93, %v88
  %v96 = vsub.f32 %v94, %v95
  %v97 = vmul.f32 %v93, %v82
  %v98 = vmul.f32 %v92, %v88
  %v99 = vadd.f32 %v97, %v98
  %v100 = vmul.f32 %v92, %v85
  %v101 = vmul.f32 %v93, %v91
  %v102 = vsub.f32 %v100, %v101
  %v103 = vmul.f32 %v93, %v85
  %v104 = vmul.f32 %v92, %v91
  %v105 = vadd.f32 %v103, %v104
  %v106 = vld [vmem:[%s0 + $0x18] sm:$0xf]
  %v107 = vld [vmem:[%s1 + $0x18] sm:$0xf]
  %v108 = vmul.f32 %v106, %v96
  %v109 = vmul.f32 %v107, %v102
  %v110 = vadd.f32 %v108, %v109
  %v111 = vmul.f32 %v106, %v102
  %v112 = vmul.f32 %v107, %v96
  %v113 = vsub.f32 %v111, %v112
  %v114 = vmul.f32 %v106, %v99
  %v115 = vmul.f32 %v107, %v105
  %v116 = vsub.f32 %v114, %v115
  %v117 = vmul.f32 %v106, %v105
  %v118 = vmul.f32 %v107, %v99
  %v119 = vadd.f32 %v117, %v118
  %v120 = vld [vmem:[%s0 + $0x1c] sm:$0xf]
  %v121 = vld [vmem:[%s1 + $0x1c] sm:$0xf]
  %v122 = vmul.f32 %v120, %v110
  %v123 = vmul.f32 %v121, %v116
  %v124 = vsub.f32 %v122, %v123
  %v125 = vmul.f32 %v121, %v110
  %v126 = vmul.f32 %v120, %v116
  %v127 = vadd.f32 %v125, %v126
  %v128 = vmul.f32 %v120, %v113
  %v129 = vmul.f32 %v121, %v119
  %v130 = vsub.f32 %v128, %v129
  %v131 = vmul.f32 %v121, %v113
  %v132 = vmul.f32 %v120, %v119
  %v133 = vadd.f32 %v131, %v132
  %v134 = vld [vmem:[%s0 + $0x20] sm:$0xf]
  %v135 = vld [vmem:[%s1 + $0x20] sm:$0xf]
  %v136 = vmul.f32 %v134, %v124
  %v137 = vmul.f32 %v135, %v130
  %v138 = vadd.f32 %v136, %v137
  %v139 = vmul.f32 %v134, %v130
  %v140 = vmul.f32 %v135, %v124
  %v141 = vsub.f32 %v139, %v140
  %v142 = vmul.f32 %v134, %v127
  %v143 = vmul.f32 %v135, %v133
  %v144 = vsub.f32 %v142, %v143
  %v145 = vmul.f32 %v134, %v133
  %v146 = vmul.f32 %v135, %v127
  %v147 = vadd.f32 %v145, %v146
  %v148 = vld [vmem:[%s0 + $0x24] sm:$0xf]
  %v149 = vld [vmem:[%s1 + $0x24] sm:$0xf]
  %v150 = vmul.f32 %v148, %v138
  %v151 = vmul.f32 %v149, %v144
  %v152 = vsub.f32 %v150, %v151
  %v153 = vmul.f32 %v149, %v138
  %v154 = vmul.f32 %v148, %v144
  %v155 = vadd.f32 %v153, %v154
  %v156 = vmul.f32 %v148, %v141
  %v157 = vmul.f32 %v149, %v147
  %v158 = vsub.f32 %v156, %v157
  %v159 = vmul.f32 %v149, %v141
  %v160 = vmul.f32 %v148, %v147
  %v161 = vadd.f32 %v159, %v160
  %v162 = vld [vmem:[%s0 + $0x28] sm:$0xf]
  %v163 = vld [vmem:[%s1 + $0x28] sm:$0xf]
  %v164 = vmul.f32 %v162, %v152
  %v165 = vmul.f32 %v163, %v158
  %v166 = vadd.f32 %v164, %v165
  %v167 = vmul.f32 %v162, %v158
  %v168 = vmul.f32 %v163, %v152
  %v169 = vsub.f32 %v167, %v168
  %v170 = vmul.f32 %v162, %v155
  %v171 = vmul.f32 %v163, %v161
  %v172 = vsub.f32 %v170, %v171
  %v173 = vmul.f32 %v162, %v161
  %v174 = vmul.f32 %v163, %v155
  %v175 = vadd.f32 %v173, %v174
  %v176 = vld [vmem:[%s0 + $0x2c] sm:$0xf]
  %v177 = vld [vmem:[%s1 + $0x2c] sm:$0xf]
  %v178 = vmul.f32 %v176, %v166
  %v179 = vmul.f32 %v177, %v172
  %v180 = vsub.f32 %v178, %v179
  %v181 = vmul.f32 %v177, %v166
  %v182 = vmul.f32 %v176, %v172
  %v183 = vadd.f32 %v181, %v182
  %v184 = vmul.f32 %v176, %v169
  %v185 = vmul.f32 %v177, %v175
  %v186 = vsub.f32 %v184, %v185
  %v187 = vmul.f32 %v177, %v169
  %v188 = vmul.f32 %v176, %v175
  %v189 = vadd.f32 %v187, %v188
  %v190 = vld [vmem:[%s0 + $0x30] sm:$0xf]
  %v191 = vld [vmem:[%s1 + $0x30] sm:$0xf]
  %v192 = vmul.f32 %v190, %v180
  %v193 = vmul.f32 %v191, %v186
  %v194 = vadd.f32 %v192, %v193
  %v195 = vmul.f32 %v190, %v186
  %v196 = vmul.f32 %v191, %v180
  %v197 = vsub.f32 %v195, %v196
  %v198 = vmul.f32 %v190, %v183
  %v199 = vmul.f32 %v191, %v189
  %v200 = vsub.f32 %v198, %v199
  %v201 = vmul.f32 %v190, %v189
  %v202 = vmul.f32 %v191, %v183
  %v203 = vadd.f32 %v201, %v202
  %v204 = vld [vmem:[%s0 + $0x34] sm:$0xf]
  %v205 = vld [vmem:[%s1 + $0x34] sm:$0xf]
  %v206 = vmul.f32 %v204, %v194
  %v207 = vmul.f32 %v205, %v200
  %v208 = vsub.f32 %v206, %v207
  %v209 = vmul.f32 %v205, %v194
  %v210 = vmul.f32 %v204, %v200
  %v211 = vadd.f32 %v209, %v210
  %v212 = vmul.f32 %v204, %v197
  %v213 = vmul.f32 %v205, %v203
  %v214 = vsub.f32 %v212, %v213
  %v215 = vmul.f32 %v205, %v197
  %v216 = vmul.f32 %v204, %v203
  %v217 = vadd.f32 %v215, %v216
  %v218 = vld [vmem:[%s0 + $0x38] sm:$0xf]
  %v219 = vld [vmem:[%s1 + $0x38] sm:$0xf]
  %v220 = vmul.f32 %v218, %v208
  %v221 = vmul.f32 %v219, %v214
  %v222 = vadd.f32 %v220, %v221
  %v223 = vmul.f32 %v218, %v214
  %v224 = vmul.f32 %v219, %v208
  %v225 = vsub.f32 %v223, %v224
  %v226 = vmul.f32 %v218, %v211
  %v227 = vmul.f32 %v219, %v217
  %v228 = vsub.f32 %v226, %v227
  %v229 = vmul.f32 %v218, %v217
  %v230 = vmul.f32 %v219, %v211
  %v231 = vadd.f32 %v229, %v230
  %v232 = vld [vmem:[%s0 + $0x3c] sm:$0xf]
  %v233 = vld [vmem:[%s1 + $0x3c] sm:$0xf]
  %v234 = vmul.f32 %v232, %v222
  %v235 = vmul.f32 %v233, %v228
  %v236 = vsub.f32 %v234, %v235
  %v237 = vmul.f32 %v233, %v222
  %v238 = vmul.f32 %v232, %v228
  %v239 = vadd.f32 %v237, %v238
  %v240 = vmul.f32 %v232, %v225
  %v241 = vmul.f32 %v233, %v231
  %v242 = vsub.f32 %v240, %v241
  %v243 = vmul.f32 %v233, %v225
  %v244 = vmul.f32 %v232, %v231
  %v245 = vadd.f32 %v243, %v244
  %v246 = vld [vmem:[%s0 + $0x40] sm:$0xf]
  %v247 = vld [vmem:[%s1 + $0x40] sm:$0xf]
  %v248 = vmul.f32 %v246, %v236
  %v249 = vmul.f32 %v247, %v242
  %v250 = vadd.f32 %v248, %v249
  %v251 = vmul.f32 %v246, %v242
  %v252 = vmul.f32 %v247, %v236
  %v253 = vsub.f32 %v251, %v252
  %v254 = vmul.f32 %v246, %v239
  %v255 = vmul.f32 %v247, %v245
  %v256 = vsub.f32 %v254, %v255
  %v257 = vmul.f32 %v246, %v245
  %v258 = vmul.f32 %v247, %v239
  %v259 = vadd.f32 %v257, %v258
  %v260 = vld [vmem:[%s2] sm:$0xff]
  %v261 = vld [vmem:[%s2 + $0x8] sm:$0xff]
  %v262 = vld [vmem:[%s2 + $0x10] sm:$0xff]
  %v263 = vld [vmem:[%s2 + $0x18] sm:$0xff]
  %v264 = vld [vmem:[%s2 + $0x20] sm:$0xff]
  %v265 = vld [vmem:[%s2 + $0x28] sm:$0xff]
  %v266 = vld [vmem:[%s2 + $0x30] sm:$0xff]
  %v267 = vld [vmem:[%s2 + $0x38] sm:$0xff]
  %v268 = vld [vmem:[%s3] sm:$0xff]
  %v269 = vld [vmem:[%s3 + $0x8] sm:$0xff]
  %v270 = vld [vmem:[%s3 + $0x10] sm:$0xff]
  %v271 = vld [vmem:[%s3 + $0x18] sm:$0xff]
  %v272 = vld [vmem:[%s3 + $0x20] sm:$0xff]
  %v273 = vld [vmem:[%s3 + $0x28] sm:$0xff]
  %v274 = vld [vmem:[%s3 + $0x30] sm:$0xff]
  %v275 = vld [vmem:[%s3 + $0x38] sm:$0xff]
  %vm276 = vcmask 31744
  %v278 = vsel %vm276, %v268, 0
  %v281 = vsel %vm276, %v269, 0
  %v284 = vsel %vm276, %v270, 0
  %v287 = vsel %vm276, %v271, 0
  %v290 = vsel %vm276, %v272, 0
  %v293 = vsel %vm276, %v273, 0
  %v296 = vsel %vm276, %v274, 0
  %v299 = vsel %vm276, %v275, 0
  %vm301 = vcmask 1043456
  %v303 = vsel %vm301, %v256, 0
  %305 = vmatprep.subr.mxu0 0.0
  %306 = vmatpush1.msra.mxu0 %v303
  %307 = vmatprep.subr.mxu0 0.0
  %308 = vmatpush1.msra.mxu0 0.0
  %309 = vmatprep.subr.mxu0 0.0
  %310 = vmatpush1.msra.mxu0 0.0
  %311 = vmatprep.subr.mxu0 0.0
  %312 = vmatpush1.msra.mxu0 0.0
  %313 = vmatprep.subr.mxu0 0.0
  %314 = vmatpush1.msra.mxu0 0.0
  %315 = vmatprep.subr.mxu0 0.0
  %316 = vmatpush1.msra.mxu0 0.0
  %317 = vmatprep.subr.mxu0 0.0
  %318 = vmatpush1.msra.mxu0 0.0
  %319 = vmatprep.subr.mxu0 0.0
  %320 = vmatpush1.msra.mxu0 0.0
  %321 = vmatprep.subr.mxu0 0.0
  %322 = vmatpush1.msra.mxu0 0.0
  %323 = vmatprep.subr.mxu0 0.0
  %324 = vmatpush1.msra.mxu0 0.0
  %325 = vmatprep.subr.mxu0 0.0
  %326 = vmatpush1.msra.mxu0 0.0
  %327 = vmatprep.subr.mxu0 0.0
  %328 = vmatpush1.msra.mxu0 0.0
  %329 = vmatprep.subr.mxu0 0.0
  %330 = vmatpush1.msra.mxu0 0.0
  %331 = vmatprep.subr.mxu0 0.0
  %332 = vmatpush1.msra.mxu0 0.0
  %333 = vmatprep.subr.mxu0 0.0
  %334 = vmatpush1.msra.mxu0 0.0
  %335 = vmatprep.subr.mxu0 0.0
  %336 = vmatpush1.msra.mxu0 0.0
  %337 = vmatprep.subr.mxu0 0.0
  %338 = vmatpush1.msra.mxu0 0.0
  %339 = vmatprep.subr.mxu0 0.0
  %340 = vmatpush1.msra.mxu0 0.0
  %341 = vmatprep.subr.mxu0 0.0
  %342 = vmatpush1.msra.mxu0 0.0
  %343 = vmatprep.subr.mxu0 0.0
  %344 = vmatpush1.msra.mxu0 0.0
  %345 = vmatprep.subr.mxu0 0.0
  %346 = vmatpush1.msra.mxu0 0.0
  %347 = vmatprep.subr.mxu0 0.0
  %348 = vmatpush1.msra.mxu0 0.0
  %349 = vmatprep.subr.mxu0 0.0
  %350 = vmatpush1.msra.mxu0 0.0
  %351 = vmatprep.subr.mxu0 0.0
  %352 = vmatpush1.msra.mxu0 0.0
  %353 = vmatprep.subr.mxu0 0.0
  %354 = vmatpush1.msra.mxu0 0.0
  %355 = vmatprep.subr.mxu0 0.0
  %356 = vmatpush1.msra.mxu0 0.0
  %357 = vmatprep.subr.mxu0 0.0
  %358 = vmatpush1.msra.mxu0 0.0
  %359 = vmatprep.subr.mxu0 0.0
  %360 = vmatpush1.msra.mxu0 0.0
  %361 = vmatprep.subr.mxu0 0.0
  %362 = vmatpush1.msra.mxu0 0.0
  %363 = vmatprep.subr.mxu0 0.0
  %364 = vmatpush1.msra.mxu0 0.0
  %365 = vmatprep.subr.mxu0 0.0
  %366 = vmatpush1.msra.mxu0 0.0
  %367 = vmatprep.subr.mxu0 0.0
  %368 = vmatpush1.msra.mxu0 0.0
  %369 = vmatprep.mubr.f32.mxu0 0.0
  %370 = vmatmul.mubr.f32.gmra.mrb[0].mxu0 %v278
  %v371 = vpop.f32.mrb[0].mxu0
  %v372 = vadd.f32 0.0, %v371
  %v373 = vpop.f32.mrb[0].mxu0
  %374 = vmatprep.mubr.f32.mxu0 0.0
  %375 = vmatmul.mubr.f32.gmra.mrb[0].mxu0 %v281
  %v376 = vpop.f32.mrb[0].mxu0
  %v377 = vadd.f32 0.0, %v376
  %v378 = vpop.f32.mrb[0].mxu0
  %379 = vmatprep.mubr.f32.mxu0 0.0
  %380 = vmatmul.mubr.f32.gmra.mrb[0].mxu0 %v284
  %v381 = vpop.f32.mrb[0].mxu0
  %v382 = vadd.f32 0.0, %v381
  %v383 = vpop.f32.mrb[0].mxu0
  %384 = vmatprep.mubr.f32.mxu0 0.0
  %385 = vmatmul.mubr.f32.gmra.mrb[0].mxu0 %v287
  %v386 = vpop.f32.mrb[0].mxu0
  %v387 = vadd.f32 0.0, %v386
  %v388 = vpop.f32.mrb[0].mxu0
  %389 = vmatprep.mubr.f32.mxu0 0.0
  %390 = vmatmul.mubr.f32.gmra.mrb[0].mxu0 %v290
  %v391 = vpop.f32.mrb[0].mxu0
  %v392 = vadd.f32 0.0, %v391
  %v393 = vpop.f32.mrb[0].mxu0
  %394 = vmatprep.mubr.f32.mxu0 0.0
  %395 = vmatmul.mubr.f32.gmra.mrb[0].mxu0 %v293
  %v396 = vpop.f32.mrb[0].mxu0
  %v397 = vadd.f32 0.0, %v396
  %v398 = vpop.f32.mrb[0].mxu0
  %399 = vmatprep.mubr.f32.mxu0 0.0
  %400 = vmatmul.mubr.f32.gmra.mrb[0].mxu0 %v296
  %v401 = vpop.f32.mrb[0].mxu0
  %v402 = vadd.f32 0.0, %v401
  %v403 = vpop.f32.mrb[0].mxu0
  %404 = vmatprep.mubr.f32.mxu0 0.0
  %405 = vmatmul.mubr.f32.gmra.mrb[0].mxu0 %v299
  %v406 = vpop.f32.mrb[0].mxu0
  %v407 = vadd.f32 0.0, %v406
  %v408 = vpop.f32.mrb[0].mxu0
  %409 = vdwg.mxu0
  %v411 = vsel %vm276, %v260, 0
  %v414 = vsel %vm276, %v261, 0
  %v417 = vsel %vm276, %v262, 0
  %v420 = vsel %vm276, %v263, 0
  %v423 = vsel %vm276, %v264, 0
  %v426 = vsel %vm276, %v265, 0
  %v429 = vsel %vm276, %v266, 0
  %v432 = vsel %vm276, %v267, 0
  %v435 = vsel %vm301, %v250, 0
  %437 = vmatprep.subr.mxu0 0.0
  %438 = vmatpush1.msra.mxu0 %v435
  %439 = vmatprep.subr.mxu0 0.0
  %440 = vmatpush1.msra.mxu0 0.0
  %441 = vmatprep.subr.mxu0 0.0
  %442 = vmatpush1.msra.mxu0 0.0
  %443 = vmatprep.subr.mxu0 0.0
  %444 = vmatpush1.msra.mxu0 0.0
  %445 = vmatprep.subr.mxu0 0.0
  %446 = vmatpush1.msra.mxu0 0.0
  %447 = vmatprep.subr.mxu0 0.0
  %448 = vmatpush1.msra.mxu0 0.0
  %449 = vmatprep.subr.mxu0 0.0
  %450 = vmatpush1.msra.mxu0 0.0
  %451 = vmatprep.subr.mxu0 0.0
  %452 = vmatpush1.msra.mxu0 0.0
  %453 = vmatprep.subr.mxu0 0.0
  %454 = vmatpush1.msra.mxu0 0.0
  %455 = vmatprep.subr.mxu0 0.0
  %456 = vmatpush1.msra.mxu0 0.0
  %457 = vmatprep.subr.mxu0 0.0
  %458 = vmatpush1.msra.mxu0 0.0
  %459 = vmatprep.subr.mxu0 0.0
  %460 = vmatpush1.msra.mxu0 0.0
  %461 = vmatprep.subr.mxu0 0.0
  %462 = vmatpush1.msra.mxu0 0.0
  %463 = vmatprep.subr.mxu0 0.0
  %464 = vmatpush1.msra.mxu0 0.0
  %465 = vmatprep.subr.mxu0 0.0
  %466 = vmatpush1.msra.mxu0 0.0
  %467 = vmatprep.subr.mxu0 0.0
  %468 = vmatpush1.msra.mxu0 0.0
  %469 = vmatprep.subr.mxu0 0.0
  %470 = vmatpush1.msra.mxu0 0.0
  %471 = vmatprep.subr.mxu0 0.0
  %472 = vmatpush1.msra.mxu0 0.0
  %473 = vmatprep.subr.mxu0 0.0
  %474 = vmatpush1.msra.mxu0 0.0
  %475 = vmatprep.subr.mxu0 0.0
  %476 = vmatpush1.msra.mxu0 0.0
  %477 = vmatprep.subr.mxu0 0.0
  %478 = vmatpush1.msra.mxu0 0.0
  %479 = vmatprep.subr.mxu0 0.0
  %480 = vmatpush1.msra.mxu0 0.0
  %481 = vmatprep.subr.mxu0 0.0
  %482 = vmatpush1.msra.mxu0 0.0
  %483 = vmatprep.subr.mxu0 0.0
  %484 = vmatpush1.msra.mxu0 0.0
  %485 = vmatprep.subr.mxu0 0.0
  %486 = vmatpush1.msra.mxu0 0.0
  %487 = vmatprep.subr.mxu0 0.0
  %488 = vmatpush1.msra.mxu0 0.0
  %489 = vmatprep.subr.mxu0 0.0
  %490 = vmatpush1.msra.mxu0 0.0
  %491 = vmatprep.subr.mxu0 0.0
  %492 = vmatpush1.msra.mxu0 0.0
  %493 = vmatprep.subr.mxu0 0.0
  %494 = vmatpush1.msra.mxu0 0.0
  %495 = vmatprep.subr.mxu0 0.0
  %496 = vmatpush1.msra.mxu0 0.0
  %497 = vmatprep.subr.mxu0 0.0
  %498 = vmatpush1.msra.mxu0 0.0
  %499 = vmatprep.subr.mxu0 0.0
  %500 = vmatpush1.msra.mxu0 0.0
  %501 = vmatprep.mubr.f32.mxu0 0.0
  %502 = vmatmul.mubr.f32.gmra.mrb[0].mxu0 %v411
  %v503 = vpop.f32.mrb[0].mxu0
  %v504 = vadd.f32 %v372, %v503
  %v505 = vpop.f32.mrb[0].mxu0
  %506 = vmatprep.mubr.f32.mxu0 0.0
  %507 = vmatmul.mubr.f32.gmra.mrb[0].mxu0 %v414
  %v508 = vpop.f32.mrb[0].mxu0
  %v509 = vadd.f32 %v377, %v508
  %v510 = vpop.f32.mrb[0].mxu0
  %511 = vmatprep.mubr.f32.mxu0 0.0
  %512 = vmatmul.mubr.f32.gmra.mrb[0].mxu0 %v417
  %v513 = vpop.f32.mrb[0].mxu0
  %v514 = vadd.f32 %v382, %v513
  %v515 = vpop.f32.mrb[0].mxu0
  %516 = vmatprep.mubr.f32.mxu0 0.0
  %517 = vmatmul.mubr.f32.gmra.mrb[0].mxu0 %v420
  %v518 = vpop.f32.mrb[0].mxu0
  %v519 = vadd.f32 %v387, %v518
  %v520 = vpop.f32.mrb[0].mxu0
  %521 = vmatprep.mubr.f32.mxu0 0.0
  %522 = vmatmul.mubr.f32.gmra.mrb[0].mxu0 %v423
  %v523 = vpop.f32.mrb[0].mxu0
  %v524 = vadd.f32 %v392, %v523
  %v525 = vpop.f32.mrb[0].mxu0
  %526 = vmatprep.mubr.f32.mxu0 0.0
  %527 = vmatmul.mubr.f32.gmra.mrb[0].mxu0 %v426
  %v528 = vpop.f32.mrb[0].mxu0
  %v529 = vadd.f32 %v397, %v528
  %v530 = vpop.f32.mrb[0].mxu0
  %531 = vmatprep.mubr.f32.mxu0 0.0
  %532 = vmatmul.mubr.f32.gmra.mrb[0].mxu0 %v429
  %v533 = vpop.f32.mrb[0].mxu0
  %v534 = vadd.f32 %v402, %v533
  %v535 = vpop.f32.mrb[0].mxu0
  %536 = vmatprep.mubr.f32.mxu0 0.0
  %537 = vmatmul.mubr.f32.gmra.mrb[0].mxu0 %v432
  %v538 = vpop.f32.mrb[0].mxu0
  %v539 = vadd.f32 %v407, %v538
  %v540 = vpop.f32.mrb[0].mxu0
  %541 = vdwg.mxu0
  %v543 = vsel %vm301, %v259, 0
  %545 = vmatprep.subr.mxu0 0.0
  %546 = vmatpush1.msra.mxu0 %v543
  %547 = vmatprep.subr.mxu0 0.0
  %548 = vmatpush1.msra.mxu0 0.0
  %549 = vmatprep.subr.mxu0 0.0
  %550 = vmatpush1.msra.mxu0 0.0
  %551 = vmatprep.subr.mxu0 0.0
  %552 = vmatpush1.msra.mxu0 0.0
  %553 = vmatprep.subr.mxu0 0.0
  %554 = vmatpush1.msra.mxu0 0.0
  %555 = vmatprep.subr.mxu0 0.0
  %556 = vmatpush1.msra.mxu0 0.0
  %557 = vmatprep.subr.mxu0 0.0
  %558 = vmatpush1.msra.mxu0 0.0
  %559 = vmatprep.subr.mxu0 0.0
  %560 = vmatpush1.msra.mxu0 0.0
  %561 = vmatprep.subr.mxu0 0.0
  %562 = vmatpush1.msra.mxu0 0.0
  %563 = vmatprep.subr.mxu0 0.0
  %564 = vmatpush1.msra.mxu0 0.0
  %565 = vmatprep.subr.mxu0 0.0
  %566 = vmatpush1.msra.mxu0 0.0
  %567 = vmatprep.subr.mxu0 0.0
  %568 = vmatpush1.msra.mxu0 0.0
  %569 = vmatprep.subr.mxu0 0.0
  %570 = vmatpush1.msra.mxu0 0.0
  %571 = vmatprep.subr.mxu0 0.0
  %572 = vmatpush1.msra.mxu0 0.0
  %573 = vmatprep.subr.mxu0 0.0
  %574 = vmatpush1.msra.mxu0 0.0
  %575 = vmatprep.subr.mxu0 0.0
  %576 = vmatpush1.msra.mxu0 0.0
  %577 = vmatprep.subr.mxu0 0.0
  %578 = vmatpush1.msra.mxu0 0.0
  %579 = vmatprep.subr.mxu0 0.0
  %580 = vmatpush1.msra.mxu0 0.0
  %581 = vmatprep.subr.mxu0 0.0
  %582 = vmatpush1.msra.mxu0 0.0
  %583 = vmatprep.subr.mxu0 0.0
  %584 = vmatpush1.msra.mxu0 0.0
  %585 = vmatprep.subr.mxu0 0.0
  %586 = vmatpush1.msra.mxu0 0.0
  %587 = vmatprep.subr.mxu0 0.0
  %588 = vmatpush1.msra.mxu0 0.0
  %589 = vmatprep.subr.mxu0 0.0
  %590 = vmatpush1.msra.mxu0 0.0
  %591 = vmatprep.subr.mxu0 0.0
  %592 = vmatpush1.msra.mxu0 0.0
  %593 = vmatprep.subr.mxu0 0.0
  %594 = vmatpush1.msra.mxu0 0.0
  %595 = vmatprep.subr.mxu0 0.0
  %596 = vmatpush1.msra.mxu0 0.0
  %597 = vmatprep.subr.mxu0 0.0
  %598 = vmatpush1.msra.mxu0 0.0
  %599 = vmatprep.subr.mxu0 0.0
  %600 = vmatpush1.msra.mxu0 0.0
  %601 = vmatprep.subr.mxu0 0.0
  %602 = vmatpush1.msra.mxu0 0.0
  %603 = vmatprep.subr.mxu0 0.0
  %604 = vmatpush1.msra.mxu0 0.0
  %605 = vmatprep.subr.mxu0 0.0
  %606 = vmatpush1.msra.mxu0 0.0
  %607 = vmatprep.subr.mxu0 0.0
  %608 = vmatpush1.msra.mxu0 0.0
  %609 = vmatprep.mubr.f32.mxu0 0.0
  %610 = vmatmul.mubr.f32.gmra.mrb[0].mxu0 %v278
  %v611 = vpop.f32.mrb[0].mxu0
  %v612 = vadd.f32 0.0, %v611
  %v613 = vpop.f32.mrb[0].mxu0
  %614 = vmatprep.mubr.f32.mxu0 0.0
  %615 = vmatmul.mubr.f32.gmra.mrb[0].mxu0 %v281
  %v616 = vpop.f32.mrb[0].mxu0
  %v617 = vadd.f32 0.0, %v616
  %v618 = vpop.f32.mrb[0].mxu0
  %619 = vmatprep.mubr.f32.mxu0 0.0
  %620 = vmatmul.mubr.f32.gmra.mrb[0].mxu0 %v284
  %v621 = vpop.f32.mrb[0].mxu0
  %v622 = vadd.f32 0.0, %v621
  %v623 = vpop.f32.mrb[0].mxu0
  %624 = vmatprep.mubr.f32.mxu0 0.0
  %625 = vmatmul.mubr.f32.gmra.mrb[0].mxu0 %v287
  %v626 = vpop.f32.mrb[0].mxu0
  %v627 = vadd.f32 0.0, %v626
  %v628 = vpop.f32.mrb[0].mxu0
  %629 = vmatprep.mubr.f32.mxu0 0.0
  %630 = vmatmul.mubr.f32.gmra.mrb[0].mxu0 %v290
  %v631 = vpop.f32.mrb[0].mxu0
  %v632 = vadd.f32 0.0, %v631
  %v633 = vpop.f32.mrb[0].mxu0
  %634 = vmatprep.mubr.f32.mxu0 0.0
  %635 = vmatmul.mubr.f32.gmra.mrb[0].mxu0 %v293
  %v636 = vpop.f32.mrb[0].mxu0
  %v637 = vadd.f32 0.0, %v636
  %v638 = vpop.f32.mrb[0].mxu0
  %639 = vmatprep.mubr.f32.mxu0 0.0
  %640 = vmatmul.mubr.f32.gmra.mrb[0].mxu0 %v296
  %v641 = vpop.f32.mrb[0].mxu0
  %v642 = vadd.f32 0.0, %v641
  %v643 = vpop.f32.mrb[0].mxu0
  %644 = vmatprep.mubr.f32.mxu0 0.0
  %645 = vmatmul.mubr.f32.gmra.mrb[0].mxu0 %v299
  %v646 = vpop.f32.mrb[0].mxu0
  %v647 = vadd.f32 0.0, %v646
  %v648 = vpop.f32.mrb[0].mxu0
  %649 = vdwg.mxu0
  %v651 = vsel %vm301, %v253, 0
  %653 = vmatprep.subr.mxu0 0.0
  %654 = vmatpush1.msra.mxu0 %v651
  %655 = vmatprep.subr.mxu0 0.0
  %656 = vmatpush1.msra.mxu0 0.0
  %657 = vmatprep.subr.mxu0 0.0
  %658 = vmatpush1.msra.mxu0 0.0
  %659 = vmatprep.subr.mxu0 0.0
  %660 = vmatpush1.msra.mxu0 0.0
  %661 = vmatprep.subr.mxu0 0.0
  %662 = vmatpush1.msra.mxu0 0.0
  %663 = vmatprep.subr.mxu0 0.0
  %664 = vmatpush1.msra.mxu0 0.0
  %665 = vmatprep.subr.mxu0 0.0
  %666 = vmatpush1.msra.mxu0 0.0
  %667 = vmatprep.subr.mxu0 0.0
  %668 = vmatpush1.msra.mxu0 0.0
  %669 = vmatprep.subr.mxu0 0.0
  %670 = vmatpush1.msra.mxu0 0.0
  %671 = vmatprep.subr.mxu0 0.0
  %672 = vmatpush1.msra.mxu0 0.0
  %673 = vmatprep.subr.mxu0 0.0
  %674 = vmatpush1.msra.mxu0 0.0
  %675 = vmatprep.subr.mxu0 0.0
  %676 = vmatpush1.msra.mxu0 0.0
  %677 = vmatprep.subr.mxu0 0.0
  %678 = vmatpush1.msra.mxu0 0.0
  %679 = vmatprep.subr.mxu0 0.0
  %680 = vmatpush1.msra.mxu0 0.0
  %681 = vmatprep.subr.mxu0 0.0
  %682 = vmatpush1.msra.mxu0 0.0
  %683 = vmatprep.subr.mxu0 0.0
  %684 = vmatpush1.msra.mxu0 0.0
  %685 = vmatprep.subr.mxu0 0.0
  %686 = vmatpush1.msra.mxu0 0.0
  %687 = vmatprep.subr.mxu0 0.0
  %688 = vmatpush1.msra.mxu0 0.0
  %689 = vmatprep.subr.mxu0 0.0
  %690 = vmatpush1.msra.mxu0 0.0
  %691 = vmatprep.subr.mxu0 0.0
  %692 = vmatpush1.msra.mxu0 0.0
  %693 = vmatprep.subr.mxu0 0.0
  %694 = vmatpush1.msra.mxu0 0.0
  %695 = vmatprep.subr.mxu0 0.0
  %696 = vmatpush1.msra.mxu0 0.0
  %697 = vmatprep.subr.mxu0 0.0
  %698 = vmatpush1.msra.mxu0 0.0
  %699 = vmatprep.subr.mxu0 0.0
  %700 = vmatpush1.msra.mxu0 0.0
  %701 = vmatprep.subr.mxu0 0.0
  %702 = vmatpush1.msra.mxu0 0.0
  %703 = vmatprep.subr.mxu0 0.0
  %704 = vmatpush1.msra.mxu0 0.0
  %705 = vmatprep.subr.mxu0 0.0
  %706 = vmatpush1.msra.mxu0 0.0
  %707 = vmatprep.subr.mxu0 0.0
  %708 = vmatpush1.msra.mxu0 0.0
  %709 = vmatprep.subr.mxu0 0.0
  %710 = vmatpush1.msra.mxu0 0.0
  %711 = vmatprep.subr.mxu0 0.0
  %712 = vmatpush1.msra.mxu0 0.0
  %713 = vmatprep.subr.mxu0 0.0
  %714 = vmatpush1.msra.mxu0 0.0
  %715 = vmatprep.subr.mxu0 0.0
  %716 = vmatpush1.msra.mxu0 0.0
  %717 = vmatprep.mubr.f32.mxu0 0.0
  %718 = vmatmul.mubr.f32.gmra.mrb[0].mxu0 %v411
  %v719 = vpop.f32.mrb[0].mxu0
  %v720 = vadd.f32 %v612, %v719
  %v721 = vpop.f32.mrb[0].mxu0
  %722 = vmatprep.mubr.f32.mxu0 0.0
  %723 = vmatmul.mubr.f32.gmra.mrb[0].mxu0 %v414
  %v724 = vpop.f32.mrb[0].mxu0
  %v725 = vadd.f32 %v617, %v724
  %v726 = vpop.f32.mrb[0].mxu0
  %727 = vmatprep.mubr.f32.mxu0 0.0
  %728 = vmatmul.mubr.f32.gmra.mrb[0].mxu0 %v417
  %v729 = vpop.f32.mrb[0].mxu0
  %v730 = vadd.f32 %v622, %v729
  %v731 = vpop.f32.mrb[0].mxu0
  %732 = vmatprep.mubr.f32.mxu0 0.0
  %733 = vmatmul.mubr.f32.gmra.mrb[0].mxu0 %v420
  %v734 = vpop.f32.mrb[0].mxu0
  %v735 = vadd.f32 %v627, %v734
  %v736 = vpop.f32.mrb[0].mxu0
  %737 = vmatprep.mubr.f32.mxu0 0.0
  %738 = vmatmul.mubr.f32.gmra.mrb[0].mxu0 %v423
  %v739 = vpop.f32.mrb[0].mxu0
  %v740 = vadd.f32 %v632, %v739
  %v741 = vpop.f32.mrb[0].mxu0
  %742 = vmatprep.mubr.f32.mxu0 0.0
  %743 = vmatmul.mubr.f32.gmra.mrb[0].mxu0 %v426
  %v744 = vpop.f32.mrb[0].mxu0
  %v745 = vadd.f32 %v637, %v744
  %v746 = vpop.f32.mrb[0].mxu0
  %747 = vmatprep.mubr.f32.mxu0 0.0
  %748 = vmatmul.mubr.f32.gmra.mrb[0].mxu0 %v429
  %v749 = vpop.f32.mrb[0].mxu0
  %v750 = vadd.f32 %v642, %v749
  %v751 = vpop.f32.mrb[0].mxu0
  %752 = vmatprep.mubr.f32.mxu0 0.0
  %753 = vmatmul.mubr.f32.gmra.mrb[0].mxu0 %v432
  %v754 = vpop.f32.mrb[0].mxu0
  %v755 = vadd.f32 %v647, %v754
  %v756 = vpop.f32.mrb[0].mxu0
  %757 = vdwg.mxu0
  %v758 = vmul.f32 %v504, %v514
  %v759 = vmul.f32 %v509, %v519
  %v760 = vmul.f32 %v720, %v730
  %v761 = vmul.f32 %v725, %v735
  %v762 = vsub.f32 %v758, %v760
  %v763 = vsub.f32 %v759, %v761
  %v764 = vmul.f32 %v504, %v730
  %v765 = vmul.f32 %v509, %v735
  %v766 = vmul.f32 %v720, %v514
  %v767 = vmul.f32 %v725, %v519
  %v768 = vadd.f32 %v764, %v766
  %v769 = vadd.f32 %v765, %v767
  %v770 = vmul.f32 %v524, %v534
  %v771 = vmul.f32 %v529, %v539
  %v772 = vmul.f32 %v740, %v750
  %v773 = vmul.f32 %v745, %v755
  %v774 = vsub.f32 %v770, %v772
  %v775 = vsub.f32 %v771, %v773
  %v776 = vmul.f32 %v524, %v750
  %v777 = vmul.f32 %v529, %v755
  %v778 = vmul.f32 %v740, %v534
  %v779 = vmul.f32 %v745, %v539
  %v780 = vadd.f32 %v776, %v778
  %v781 = vadd.f32 %v777, %v779
  %v782 = vmul.f32 %v762, %v774
  %v783 = vmul.f32 %v763, %v775
  %v784 = vmul.f32 %v768, %v780
  %v785 = vmul.f32 %v769, %v781
  %v786 = vsub.f32 %v782, %v784
  %v787 = vsub.f32 %v783, %v785
  %v788 = vmul.f32 %v762, %v780
  %v789 = vmul.f32 %v763, %v781
  %v790 = vmul.f32 %v768, %v774
  %v791 = vmul.f32 %v769, %v775
  %v792 = vadd.f32 %v788, %v790
  %v793 = vadd.f32 %v789, %v791
  %v794 = vld [vmem:[%s4] sm:$0xff]
  %v795 = vld [vmem:[%s4 + $0x8] sm:$0xff]
  %v796 = vld [vmem:[%s5] sm:$0xff]
  %v797 = vld [vmem:[%s5 + $0x8] sm:$0xff]
  %vm798 = vcmask 130048
  %v800 = vsel %vm798, %v794, 0
  %v803 = vsel %vm798, %v795, 0
  %805 = vmatprep.subr.mxu0 0.0
  %806 = vmatpush1.msra.mxu0 %v786
  %807 = vmatprep.subr.mxu0 0.0
  %808 = vmatpush1.msra.mxu0 %v787
  %809 = vmatprep.subr.mxu0 0.0
  %810 = vmatpush1.msra.mxu0 0.0
  %811 = vmatprep.subr.mxu0 0.0
  %812 = vmatpush1.msra.mxu0 0.0
  %813 = vmatprep.subr.mxu0 0.0
  %814 = vmatpush1.msra.mxu0 0.0
  %815 = vmatprep.subr.mxu0 0.0
  %816 = vmatpush1.msra.mxu0 0.0
  %817 = vmatprep.subr.mxu0 0.0
  %818 = vmatpush1.msra.mxu0 0.0
  %819 = vmatprep.subr.mxu0 0.0
  %820 = vmatpush1.msra.mxu0 0.0
  %821 = vmatprep.subr.mxu0 0.0
  %822 = vmatpush1.msra.mxu0 0.0
  %823 = vmatprep.subr.mxu0 0.0
  %824 = vmatpush1.msra.mxu0 0.0
  %825 = vmatprep.subr.mxu0 0.0
  %826 = vmatpush1.msra.mxu0 0.0
  %827 = vmatprep.subr.mxu0 0.0
  %828 = vmatpush1.msra.mxu0 0.0
  %829 = vmatprep.subr.mxu0 0.0
  %830 = vmatpush1.msra.mxu0 0.0
  %831 = vmatprep.subr.mxu0 0.0
  %832 = vmatpush1.msra.mxu0 0.0
  %833 = vmatprep.subr.mxu0 0.0
  %834 = vmatpush1.msra.mxu0 0.0
  %835 = vmatprep.subr.mxu0 0.0
  %836 = vmatpush1.msra.mxu0 0.0
  %837 = vmatprep.subr.mxu0 0.0
  %838 = vmatpush1.msra.mxu0 0.0
  %839 = vmatprep.subr.mxu0 0.0
  %840 = vmatpush1.msra.mxu0 0.0
  %841 = vmatprep.subr.mxu0 0.0
  %842 = vmatpush1.msra.mxu0 0.0
  %843 = vmatprep.subr.mxu0 0.0
  %844 = vmatpush1.msra.mxu0 0.0
  %845 = vmatprep.subr.mxu0 0.0
  %846 = vmatpush1.msra.mxu0 0.0
  %847 = vmatprep.subr.mxu0 0.0
  %848 = vmatpush1.msra.mxu0 0.0
  %849 = vmatprep.subr.mxu0 0.0
  %850 = vmatpush1.msra.mxu0 0.0
  %851 = vmatprep.subr.mxu0 0.0
  %852 = vmatpush1.msra.mxu0 0.0
  %853 = vmatprep.subr.mxu0 0.0
  %854 = vmatpush1.msra.mxu0 0.0
  %855 = vmatprep.subr.mxu0 0.0
  %856 = vmatpush1.msra.mxu0 0.0
  %857 = vmatprep.subr.mxu0 0.0
  %858 = vmatpush1.msra.mxu0 0.0
  %859 = vmatprep.subr.mxu0 0.0
  %860 = vmatpush1.msra.mxu0 0.0
  %861 = vmatprep.subr.mxu0 0.0
  %862 = vmatpush1.msra.mxu0 0.0
  %863 = vmatprep.subr.mxu0 0.0
  %864 = vmatpush1.msra.mxu0 0.0
  %865 = vmatprep.subr.mxu0 0.0
  %866 = vmatpush1.msra.mxu0 0.0
  %867 = vmatprep.subr.mxu0 0.0
  %868 = vmatpush1.msra.mxu0 0.0
  %869 = vmatprep.mubr.f32.mxu0 0.0
  %870 = vmatmul.mubr.f32.gmra.mrb[0].mxu0 %v800
  %v871 = vpop.f32.mrb[0].mxu0
  %v872 = vadd.f32 0.0, %v871
  %v873 = vpop.f32.mrb[0].mxu0
  %874 = vmatprep.mubr.f32.mxu0 0.0
  %875 = vmatmul.mubr.f32.gmra.mrb[0].mxu0 %v803
  %v876 = vpop.f32.mrb[0].mxu0
  %v877 = vadd.f32 0.0, %v876
  %v878 = vpop.f32.mrb[0].mxu0
  %879 = vdwg.mxu0
  %v881 = vsel %vm798, %v796, 0
  %v884 = vsel %vm798, %v797, 0
  %886 = vmatprep.subr.mxu0 0.0
  %887 = vmatpush1.msra.mxu0 %v792
  %888 = vmatprep.subr.mxu0 0.0
  %889 = vmatpush1.msra.mxu0 %v793
  %890 = vmatprep.subr.mxu0 0.0
  %891 = vmatpush1.msra.mxu0 0.0
  %892 = vmatprep.subr.mxu0 0.0
  %893 = vmatpush1.msra.mxu0 0.0
  %894 = vmatprep.subr.mxu0 0.0
  %895 = vmatpush1.msra.mxu0 0.0
  %896 = vmatprep.subr.mxu0 0.0
  %897 = vmatpush1.msra.mxu0 0.0
  %898 = vmatprep.subr.mxu0 0.0
  %899 = vmatpush1.msra.mxu0 0.0
  %900 = vmatprep.subr.mxu0 0.0
  %901 = vmatpush1.msra.mxu0 0.0
  %902 = vmatprep.subr.mxu0 0.0
  %903 = vmatpush1.msra.mxu0 0.0
  %904 = vmatprep.subr.mxu0 0.0
  %905 = vmatpush1.msra.mxu0 0.0
  %906 = vmatprep.subr.mxu0 0.0
  %907 = vmatpush1.msra.mxu0 0.0
  %908 = vmatprep.subr.mxu0 0.0
  %909 = vmatpush1.msra.mxu0 0.0
  %910 = vmatprep.subr.mxu0 0.0
  %911 = vmatpush1.msra.mxu0 0.0
  %912 = vmatprep.subr.mxu0 0.0
  %913 = vmatpush1.msra.mxu0 0.0
  %914 = vmatprep.subr.mxu0 0.0
  %915 = vmatpush1.msra.mxu0 0.0
  %916 = vmatprep.subr.mxu0 0.0
  %917 = vmatpush1.msra.mxu0 0.0
  %918 = vmatprep.subr.mxu0 0.0
  %919 = vmatpush1.msra.mxu0 0.0
  %920 = vmatprep.subr.mxu0 0.0
  %921 = vmatpush1.msra.mxu0 0.0
  %922 = vmatprep.subr.mxu0 0.0
  %923 = vmatpush1.msra.mxu0 0.0
  %924 = vmatprep.subr.mxu0 0.0
  %925 = vmatpush1.msra.mxu0 0.0
  %926 = vmatprep.subr.mxu0 0.0
  %927 = vmatpush1.msra.mxu0 0.0
  %928 = vmatprep.subr.mxu0 0.0
  %929 = vmatpush1.msra.mxu0 0.0
  %930 = vmatprep.subr.mxu0 0.0
  %931 = vmatpush1.msra.mxu0 0.0
  %932 = vmatprep.subr.mxu0 0.0
  %933 = vmatpush1.msra.mxu0 0.0
  %934 = vmatprep.subr.mxu0 0.0
  %935 = vmatpush1.msra.mxu0 0.0
  %936 = vmatprep.subr.mxu0 0.0
  %937 = vmatpush1.msra.mxu0 0.0
  %938 = vmatprep.subr.mxu0 0.0
  %939 = vmatpush1.msra.mxu0 0.0
  %940 = vmatprep.subr.mxu0 0.0
  %941 = vmatpush1.msra.mxu0 0.0
  %942 = vmatprep.subr.mxu0 0.0
  %943 = vmatpush1.msra.mxu0 0.0
  %944 = vmatprep.subr.mxu0 0.0
  %945 = vmatpush1.msra.mxu0 0.0
  %946 = vmatprep.subr.mxu0 0.0
  %947 = vmatpush1.msra.mxu0 0.0
  %948 = vmatprep.subr.mxu0 0.0
  %949 = vmatpush1.msra.mxu0 0.0
  %950 = vmatprep.mubr.f32.mxu0 0.0
  %951 = vmatmul.mubr.f32.gmra.mrb[0].mxu0 %v881
  %v952 = vpop.f32.mrb[0].mxu0
  %v953 = vadd.f32 0.0, %v952
  %v954 = vpop.f32.mrb[0].mxu0
  %955 = vmatprep.mubr.f32.mxu0 0.0
  %956 = vmatmul.mubr.f32.gmra.mrb[0].mxu0 %v884
  %v957 = vpop.f32.mrb[0].mxu0
  %v958 = vadd.f32 0.0, %v957
  %v959 = vpop.f32.mrb[0].mxu0
  %960 = vdwg.mxu0
  %v961 = vsub.f32 %v872, %v953
  %v962 = vsub.f32 %v877, %v958
  %963 = vmatprep.subr.mxu0 0.0
  %964 = vmatpush1.msra.mxu0 %v786
  %965 = vmatprep.subr.mxu0 0.0
  %966 = vmatpush1.msra.mxu0 %v787
  %967 = vmatprep.subr.mxu0 0.0
  %968 = vmatpush1.msra.mxu0 0.0
  %969 = vmatprep.subr.mxu0 0.0
  %970 = vmatpush1.msra.mxu0 0.0
  %971 = vmatprep.subr.mxu0 0.0
  %972 = vmatpush1.msra.mxu0 0.0
  %973 = vmatprep.subr.mxu0 0.0
  %974 = vmatpush1.msra.mxu0 0.0
  %975 = vmatprep.subr.mxu0 0.0
  %976 = vmatpush1.msra.mxu0 0.0
  %977 = vmatprep.subr.mxu0 0.0
  %978 = vmatpush1.msra.mxu0 0.0
  %979 = vmatprep.subr.mxu0 0.0
  %980 = vmatpush1.msra.mxu0 0.0
  %981 = vmatprep.subr.mxu0 0.0
  %982 = vmatpush1.msra.mxu0 0.0
  %983 = vmatprep.subr.mxu0 0.0
  %984 = vmatpush1.msra.mxu0 0.0
  %985 = vmatprep.subr.mxu0 0.0
  %986 = vmatpush1.msra.mxu0 0.0
  %987 = vmatprep.subr.mxu0 0.0
  %988 = vmatpush1.msra.mxu0 0.0
  %989 = vmatprep.subr.mxu0 0.0
  %990 = vmatpush1.msra.mxu0 0.0
  %991 = vmatprep.subr.mxu0 0.0
  %992 = vmatpush1.msra.mxu0 0.0
  %993 = vmatprep.subr.mxu0 0.0
  %994 = vmatpush1.msra.mxu0 0.0
  %995 = vmatprep.subr.mxu0 0.0
  %996 = vmatpush1.msra.mxu0 0.0
  %997 = vmatprep.subr.mxu0 0.0
  %998 = vmatpush1.msra.mxu0 0.0
  %999 = vmatprep.subr.mxu0 0.0
  %1000 = vmatpush1.msra.mxu0 0.0
  %1001 = vmatprep.subr.mxu0 0.0
  %1002 = vmatpush1.msra.mxu0 0.0
  %1003 = vmatprep.subr.mxu0 0.0
  %1004 = vmatpush1.msra.mxu0 0.0
  %1005 = vmatprep.subr.mxu0 0.0
  %1006 = vmatpush1.msra.mxu0 0.0
  %1007 = vmatprep.subr.mxu0 0.0
  %1008 = vmatpush1.msra.mxu0 0.0
  %1009 = vmatprep.subr.mxu0 0.0
  %1010 = vmatpush1.msra.mxu0 0.0
  %1011 = vmatprep.subr.mxu0 0.0
  %1012 = vmatpush1.msra.mxu0 0.0
  %1013 = vmatprep.subr.mxu0 0.0
  %1014 = vmatpush1.msra.mxu0 0.0
  %1015 = vmatprep.subr.mxu0 0.0
  %1016 = vmatpush1.msra.mxu0 0.0
  %1017 = vmatprep.subr.mxu0 0.0
  %1018 = vmatpush1.msra.mxu0 0.0
  %1019 = vmatprep.subr.mxu0 0.0
  %1020 = vmatpush1.msra.mxu0 0.0
  %1021 = vmatprep.subr.mxu0 0.0
  %1022 = vmatpush1.msra.mxu0 0.0
  %1023 = vmatprep.subr.mxu0 0.0
  %1024 = vmatpush1.msra.mxu0 0.0
  %1025 = vmatprep.subr.mxu0 0.0
  %1026 = vmatpush1.msra.mxu0 0.0
  %1027 = vmatprep.mubr.f32.mxu0 0.0
  %1028 = vmatmul.mubr.f32.gmra.mrb[0].mxu0 %v881
  %v1029 = vpop.f32.mrb[0].mxu0
  %v1030 = vadd.f32 0.0, %v1029
  %v1031 = vpop.f32.mrb[0].mxu0
  %1032 = vmatprep.mubr.f32.mxu0 0.0
  %1033 = vmatmul.mubr.f32.gmra.mrb[0].mxu0 %v884
  %v1034 = vpop.f32.mrb[0].mxu0
  %v1035 = vadd.f32 0.0, %v1034
  %v1036 = vpop.f32.mrb[0].mxu0
  %1037 = vdwg.mxu0
  %1038 = vmatprep.subr.mxu0 0.0
  %1039 = vmatpush1.msra.mxu0 %v792
  %1040 = vmatprep.subr.mxu0 0.0
  %1041 = vmatpush1.msra.mxu0 %v793
  %1042 = vmatprep.subr.mxu0 0.0
  %1043 = vmatpush1.msra.mxu0 0.0
  %1044 = vmatprep.subr.mxu0 0.0
  %1045 = vmatpush1.msra.mxu0 0.0
  %1046 = vmatprep.subr.mxu0 0.0
  %1047 = vmatpush1.msra.mxu0 0.0
  %1048 = vmatprep.subr.mxu0 0.0
  %1049 = vmatpush1.msra.mxu0 0.0
  %1050 = vmatprep.subr.mxu0 0.0
  %1051 = vmatpush1.msra.mxu0 0.0
  %1052 = vmatprep.subr.mxu0 0.0
  %1053 = vmatpush1.msra.mxu0 0.0
  %1054 = vmatprep.subr.mxu0 0.0
  %1055 = vmatpush1.msra.mxu0 0.0
  %1056 = vmatprep.subr.mxu0 0.0
  %1057 = vmatpush1.msra.mxu0 0.0
  %1058 = vmatprep.subr.mxu0 0.0
  %1059 = vmatpush1.msra.mxu0 0.0
  %1060 = vmatprep.subr.mxu0 0.0
  %1061 = vmatpush1.msra.mxu0 0.0
  %1062 = vmatprep.subr.mxu0 0.0
  %1063 = vmatpush1.msra.mxu0 0.0
  %1064 = vmatprep.subr.mxu0 0.0
  %1065 = vmatpush1.msra.mxu0 0.0
  %1066 = vmatprep.subr.mxu0 0.0
  %1067 = vmatpush1.msra.mxu0 0.0
  %1068 = vmatprep.subr.mxu0 0.0
  %1069 = vmatpush1.msra.mxu0 0.0
  %1070 = vmatprep.subr.mxu0 0.0
  %1071 = vmatpush1.msra.mxu0 0.0
  %1072 = vmatprep.subr.mxu0 0.0
  %1073 = vmatpush1.msra.mxu0 0.0
  %1074 = vmatprep.subr.mxu0 0.0
  %1075 = vmatpush1.msra.mxu0 0.0
  %1076 = vmatprep.subr.mxu0 0.0
  %1077 = vmatpush1.msra.mxu0 0.0
  %1078 = vmatprep.subr.mxu0 0.0
  %1079 = vmatpush1.msra.mxu0 0.0
  %1080 = vmatprep.subr.mxu0 0.0
  %1081 = vmatpush1.msra.mxu0 0.0
  %1082 = vmatprep.subr.mxu0 0.0
  %1083 = vmatpush1.msra.mxu0 0.0
  %1084 = vmatprep.subr.mxu0 0.0
  %1085 = vmatpush1.msra.mxu0 0.0
  %1086 = vmatprep.subr.mxu0 0.0
  %1087 = vmatpush1.msra.mxu0 0.0
  %1088 = vmatprep.subr.mxu0 0.0
  %1089 = vmatpush1.msra.mxu0 0.0
  %1090 = vmatprep.subr.mxu0 0.0
  %1091 = vmatpush1.msra.mxu0 0.0
  %1092 = vmatprep.subr.mxu0 0.0
  %1093 = vmatpush1.msra.mxu0 0.0
  %1094 = vmatprep.subr.mxu0 0.0
  %1095 = vmatpush1.msra.mxu0 0.0
  %1096 = vmatprep.subr.mxu0 0.0
  %1097 = vmatpush1.msra.mxu0 0.0
  %1098 = vmatprep.subr.mxu0 0.0
  %1099 = vmatpush1.msra.mxu0 0.0
  %1100 = vmatprep.subr.mxu0 0.0
  %1101 = vmatpush1.msra.mxu0 0.0
  %1102 = vmatprep.mubr.f32.mxu0 0.0
  %1103 = vmatmul.mubr.f32.gmra.mrb[0].mxu0 %v800
  %v1104 = vpop.f32.mrb[0].mxu0
  %v1105 = vadd.f32 %v1030, %v1104
  %v1106 = vpop.f32.mrb[0].mxu0
  %1107 = vmatprep.mubr.f32.mxu0 0.0
  %1108 = vmatmul.mubr.f32.gmra.mrb[0].mxu0 %v803
  %v1109 = vpop.f32.mrb[0].mxu0
  %v1110 = vadd.f32 %v1035, %v1109
  %v1111 = vpop.f32.mrb[0].mxu0
  %1112 = vdwg.mxu0
  %v1113 = vmul.f32 %v961, %v961
  %v1114 = vmul.f32 %v962, %v962
  %v1115 = vmul.f32 %v1105, %v1105
  %v1116 = vmul.f32 %v1110, %v1110
  %v1117 = vadd.f32 %v1113, %v1115
  %v1118 = vadd.f32 %v1114, %v1116
  %v1119 = vld [vmem:[%s6] sm:$0xf]
  %v1121 = vsel %vm798, %v1119, 0
  %1123 = vmatprep.subr.mxu0 0.0
  %1124 = vmatpush1.msra.mxu0 %v1117
  %1125 = vmatprep.subr.mxu0 0.0
  %1126 = vmatpush1.msra.mxu0 %v1118
  %1127 = vmatprep.subr.mxu0 0.0
  %1128 = vmatpush1.msra.mxu0 0.0
  %1129 = vmatprep.subr.mxu0 0.0
  %1130 = vmatpush1.msra.mxu0 0.0
  %1131 = vmatprep.subr.mxu0 0.0
  %1132 = vmatpush1.msra.mxu0 0.0
  %1133 = vmatprep.subr.mxu0 0.0
  %1134 = vmatpush1.msra.mxu0 0.0
  %1135 = vmatprep.subr.mxu0 0.0
  %1136 = vmatpush1.msra.mxu0 0.0
  %1137 = vmatprep.subr.mxu0 0.0
  %1138 = vmatpush1.msra.mxu0 0.0
  %1139 = vmatprep.subr.mxu0 0.0
  %1140 = vmatpush1.msra.mxu0 0.0
  %1141 = vmatprep.subr.mxu0 0.0
  %1142 = vmatpush1.msra.mxu0 0.0
  %1143 = vmatprep.subr.mxu0 0.0
  %1144 = vmatpush1.msra.mxu0 0.0
  %1145 = vmatprep.subr.mxu0 0.0
  %1146 = vmatpush1.msra.mxu0 0.0
  %1147 = vmatprep.subr.mxu0 0.0
  %1148 = vmatpush1.msra.mxu0 0.0
  %1149 = vmatprep.subr.mxu0 0.0
  %1150 = vmatpush1.msra.mxu0 0.0
  %1151 = vmatprep.subr.mxu0 0.0
  %1152 = vmatpush1.msra.mxu0 0.0
  %1153 = vmatprep.subr.mxu0 0.0
  %1154 = vmatpush1.msra.mxu0 0.0
  %1155 = vmatprep.subr.mxu0 0.0
  %1156 = vmatpush1.msra.mxu0 0.0
  %1157 = vmatprep.subr.mxu0 0.0
  %1158 = vmatpush1.msra.mxu0 0.0
  %1159 = vmatprep.subr.mxu0 0.0
  %1160 = vmatpush1.msra.mxu0 0.0
  %1161 = vmatprep.subr.mxu0 0.0
  %1162 = vmatpush1.msra.mxu0 0.0
  %1163 = vmatprep.subr.mxu0 0.0
  %1164 = vmatpush1.msra.mxu0 0.0
  %1165 = vmatprep.subr.mxu0 0.0
  %1166 = vmatpush1.msra.mxu0 0.0
  %1167 = vmatprep.subr.mxu0 0.0
  %1168 = vmatpush1.msra.mxu0 0.0
  %1169 = vmatprep.subr.mxu0 0.0
  %1170 = vmatpush1.msra.mxu0 0.0
  %1171 = vmatprep.subr.mxu0 0.0
  %1172 = vmatpush1.msra.mxu0 0.0
  %1173 = vmatprep.subr.mxu0 0.0
  %1174 = vmatpush1.msra.mxu0 0.0
  %1175 = vmatprep.subr.mxu0 0.0
  %1176 = vmatpush1.msra.mxu0 0.0
  %1177 = vmatprep.subr.mxu0 0.0
  %1178 = vmatpush1.msra.mxu0 0.0
  %1179 = vmatprep.subr.mxu0 0.0
  %1180 = vmatpush1.msra.mxu0 0.0
  %1181 = vmatprep.subr.mxu0 0.0
  %1182 = vmatpush1.msra.mxu0 0.0
  %1183 = vmatprep.subr.mxu0 0.0
  %1184 = vmatpush1.msra.mxu0 0.0
  %1185 = vmatprep.subr.mxu0 0.0
  %1186 = vmatpush1.msra.mxu0 0.0
  %1187 = vmatprep.mubr.f32.mxu0 0.0
  %1188 = vmatmul.mubr.f32.gmra.mrb[0].mxu0 %v1121
  %v1189 = vpop.f32.mrb[0].mxu0
  %v1190 = vadd.f32 0.0, %v1189
  %v1191 = vpop.f32.mrb[0].mxu0
  %1192 = vdwg.mxu0
  %1193 = vst [vmem:[%s7] sm:$0xf] %v1190
  // Predicated region
  $region30: #{inception_forward.3} parent=0 // pred_check
    _
  $region31: #{inception_forward.3} parent=0 // pred_check_branch
    %1195 = sbr.rel (0) target = $region33
  $region32: #{inception_forward.3} parent=0 // pred_region
    _
  $region33: #{inception_forward.3} parent=0 // pred_fallthru
    _
  // Predicated region
  $region34: #{inception_forward.3} parent=0 // pred_check
    _
  $region35: #{inception_forward.3} parent=0 // pred_check_branch
    %1197 = sbr.rel (0) target = $region37
  $region36: #{inception_forward.3} parent=0 // pred_region
    _
  $region37: #{inception_forward.3} parent=0 // pred_fallthru
    _

</llo_original>
